<compile_context>
chip_gen: v5e
topology: v5e:2x2
jax: 0.10.0
libtpu: 0.0.40
codegen_flags: <defaults>
</compile_context>

<pallas_src>
import functools

import jax
import jax.numpy as jnp
from jax.experimental import pallas as pl
from jax.experimental.pallas import tpu as pltpu

BN_EPS = 1e-5


def _out_hw(size, stride):
    # Conv2d(kernel=3, padding=dilation, dilation=dilation, stride=s):
    # out = floor((size - 1) / s) + 1
    return (size - 1) // stride + 1


def _rep_spec(shape):
    """Whole-array block, identical for every grid step (grid is 1-D)."""
    return pl.BlockSpec(shape, lambda i: (0,) * len(shape))


# -----------------------------------------------------------------------------
# In-kernel helpers.
# -----------------------------------------------------------------------------
def _zero_halo(pad_ref, *, h, w, d, wlo):
    """Zero only the halo region the 3x3 taps can read (interior is fully
    rewritten every grid step, so no full-buffer zero-fill is needed)."""
    cc = pad_ref.shape[-1]
    wspan = w + 2 * d
    z_row = jnp.zeros((d, wspan, cc), jnp.float32)
    pad_ref[pl.ds(0, d), pl.ds(wlo - d, wspan), :] = z_row           # top
    pad_ref[pl.ds(d + h, d), pl.ds(wlo - d, wspan), :] = z_row       # bottom
    z_col = jnp.zeros((h, d, cc), jnp.float32)
    pad_ref[pl.ds(d, h), pl.ds(wlo - d, d), :] = z_col               # left
    pad_ref[pl.ds(d, h), pl.ds(wlo + w, d), :] = z_col               # right


def _dw3x3(pad_ref, w9b, *, ho, wo, stride, dilation, wlo):
    """3x3 depthwise conv from the padded VMEM scratch.
    w9b: (9, 1, 1, C) per-channel taps, reshaped once outside the loop."""
    d = dilation
    acc = None
    for kh in range(3):
        for kw in range(3):
            h0 = kh * d
            w0 = wlo - d + kw * d
            if stride == 1:
                tap = pad_ref[pl.ds(h0, ho), pl.ds(w0, wo), :]
            else:
                # Strided taps: only the downsampled output is computed.
                tap = pad_ref[pl.ds(h0, ho, stride=stride),
                              pl.ds(w0, wo, stride=stride), :]
            t = tap * w9b[kh * 3 + kw]
            acc = t if acc is None else acc + t
    return acc


def _store_out(o_ref, res, c2):
    """Store (hw, c2) result.  If the output block is a 128-lane slab, pack
    contiguous pixel-row groups into lane groups (dense HBM writeback)."""
    lanes = o_ref.shape[-1]
    res = res.astype(o_ref.dtype)
    if lanes == c2:
        o_ref[0] = res
    else:
        k = lanes // c2
        rows = o_ref.shape[-2]
        for j in range(k):
            o_ref[0, :, pl.ds(j * c2, c2)] = res[j * rows:(j + 1) * rows, :]


# -----------------------------------------------------------------------------
# Fused block kernels (one per stride regime).
# -----------------------------------------------------------------------------
def _block_kernel_s1(x_ref, a1_ref, b1_ref, w2_ref, a3_ref, c3_ref, e0_ref,
                     o_ref, pad_ref, *, h, w, cc, dilation, wlo):
    """stride == 1 block: out = shuffle(cat(x1, conv(x2)), groups=2)."""
    d = dilation
    x = x_ref[0]                               # (H, W, 2*Cc), bf16
    x1 = x[:, :, :cc]                          # identity half
    x2 = x[:, :, cc:]                          # conv half

    # conv1: 1x1 + BN + ReLU (BN folded into a1 / b1).  bf16 MXU, f32 acc.
    y1 = jnp.dot(x2.reshape(h * w, cc), a1_ref[...],
                 preferred_element_type=jnp.float32) + b1_ref[...]
    y1 = jnp.maximum(y1, 0.0)

    # conv2: depthwise 3x3; sublane-aligned interior write, halo-only zeroing.
    _zero_halo(pad_ref, h=h, w=w, d=d, wlo=wlo)
    pad_ref[pl.ds(d, h), pl.ds(wlo, w), :] = y1.reshape(h, w, cc)
    dw = _dw3x3(pad_ref, w2_ref[...].reshape(9, 1, 1, cc),
                ho=h, wo=w, stride=1, dilation=d, wlo=wlo)

    # conv3: 1x1 + BN + ReLU with BN2/BN3 and the odd-channel placement folded
    # into a3 / c3; identity branch placed on even channels via e0.
    z1 = jnp.dot(dw.reshape(h * w, cc).astype(jnp.bfloat16), a3_ref[...],
                 preferred_element_type=jnp.float32) + c3_ref[...]
    z1 = jnp.maximum(z1, 0.0)
    # TODO(synk): on v5e with cc > 64, replace this 0/1 placement matmul (and
    # the shuffle fold) with an XLU lane interleave to halve MXU passes.
    z0 = jnp.dot(x1.reshape(h * w, cc), e0_ref[...],
                 preferred_element_type=jnp.float32)
    _store_out(o_ref, z0 + z1, 2 * cc)         # already shuffled + concatenated


def _block_kernel_ds(x_ref, a1_ref, b1_ref, w2_ref, a3_ref, c3_ref,
                     w4_ref, a5_ref, c5_ref, o_ref, pad1_ref, pad0_ref,
                     *, h, w, cin, cc, stride, dilation, wlo):
    """stride > 1 block: out = shuffle(cat(conv0(x), conv(x)), groups=2)."""
    d = dilation
    ho, wo = _out_hw(h, stride), _out_hw(w, stride)
    x = x_ref[0]                               # (H, W, Cin), bf16

    # ---- branch 1: 1x1+BN+ReLU -> dw3x3(stride)+BN -> 1x1+BN+ReLU (odd) ----
    y1 = jnp.dot(x.reshape(h * w, cin), a1_ref[...],
                 preferred_element_type=jnp.float32) + b1_ref[...]
    y1 = jnp.maximum(y1, 0.0)
    _zero_halo(pad1_ref, h=h, w=w, d=d, wlo=wlo)
    pad1_ref[pl.ds(d, h), pl.ds(wlo, w), :] = y1.reshape(h, w, cc)
    dw1 = _dw3x3(pad1_ref, w2_ref[...].reshape(9, 1, 1, cc),
                 ho=ho, wo=wo, stride=stride, dilation=d, wlo=wlo)
    z1 = jnp.dot(dw1.reshape(ho * wo, cc).astype(jnp.bfloat16), a3_ref[...],
                 preferred_element_type=jnp.float32) + c3_ref[...]
    z1 = jnp.maximum(z1, 0.0)

    # ---- branch 0: dw3x3(stride)+BN -> 1x1+BN+ReLU (even channels) ---------
    _zero_halo(pad0_ref, h=h, w=w, d=d, wlo=wlo)
    pad0_ref[pl.ds(d, h), pl.ds(wlo, w), :] = x.astype(jnp.float32)
    dw0 = _dw3x3(pad0_ref, w4_ref[...].reshape(9, 1, 1, cin),
                 ho=ho, wo=wo, stride=stride, dilation=d, wlo=wlo)
    z0 = jnp.dot(dw0.reshape(ho * wo, cin).astype(jnp.bfloat16), a5_ref[...],
                 preferred_element_type=jnp.float32) + c5_ref[...]
    z0 = jnp.maximum(z0, 0.0)

    _store_out(o_ref, z0 + z1, 2 * cc)         # already shuffled + concatenated


# -----------------------------------------------------------------------------
# Host-side parameter folding: BN -> matmul weights, concat+shuffle -> last 1x1.
# -----------------------------------------------------------------------------
def _placement(cc, parity):
    """(Cc, 2*Cc) 0/1 matrix scattering channel i -> output channel 2*i+parity
    (== channel_shuffle(groups=2) applied to cat([branch0, branch1]))."""
    rows = jnp.arange(cc)[:, None]
    cols = jnp.arange(2 * cc)[None, :]
    return (cols == 2 * rows + parity).astype(jnp.float32)


def _fold_block_params(p, stride):
    cc = p["w1"].shape[1]
    e0, e1 = _placement(cc, 0), _placement(cc, 1)
    f = {}
    # conv1 (+BN1): relu((x@w1)*s1 + b1) == relu(x@(w1*s1) + b1)
    f["a1"] = (p["w1"] * p["s1"][None, :]).astype(jnp.bfloat16)
    f["b1"] = p["b1"].reshape(1, cc)
    f["w2"] = p["w2"].reshape(9, cc)
    # BN2 + conv3 + BN3, placed on odd output channels:
    #   relu(((dw*s2+b2)@w3)*s3 + b3) == relu(dw @ A3 + c3)
    a3 = p["s2"][:, None] * p["w3"] * p["s3"][None, :]
    c3 = (p["b2"] @ p["w3"]) * p["s3"] + p["b3"]
    f["a3"] = (a3 @ e1).astype(jnp.bfloat16)
    f["c3"] = (c3 @ e1).reshape(1, 2 * cc)
    if stride == 1:
        f["e0"] = e0.astype(jnp.bfloat16)       # identity half -> even channels
    else:
        cin = p["w4"].shape[-1]
        f["w4"] = p["w4"].reshape(9, cin)
        a5 = p["s4"][:, None] * p["w5"] * p["s5"][None, :]
        c5 = (p["b4"] @ p["w5"]) * p["s5"] + p["b5"]
        f["a5"] = (a5 @ e0).astype(jnp.bfloat16)  # branch0 -> even channels
        f["c5"] = (c5 @ e0).reshape(1, 2 * cc)
    return f


# -----------------------------------------------------------------------------
# Parameter construction (deterministic, matches the PyTorch module layout).
# -----------------------------------------------------------------------------
def _fold_bn(gamma, beta, mean, var):
    scale = gamma / jnp.sqrt(var + BN_EPS)
    bias = beta - mean * scale
    return scale, bias


def _make_bn_params(key, c):
    k1, k2, k3, k4 = jax.random.split(key, 4)
    gamma = 1.0 + 0.1 * jax.random.normal(k1, (c,), jnp.float32)
    beta = 0.1 * jax.random.normal(k2, (c,), jnp.float32)
    mean = 0.1 * jax.random.normal(k3, (c,), jnp.float32)
    var = 1.0 + 0.1 * jax.random.uniform(k4, (c,), jnp.float32)
    return _fold_bn(gamma, beta, mean, var)


def init_basic_block(key, in_channels, out_channels, stride):
    channels = out_channels // 2
    keys = jax.random.split(key, 10)
    p = {}
    c1_in = channels if stride == 1 else in_channels
    p["w1"] = 0.1 * jax.random.normal(keys[0], (c1_in, channels), jnp.float32)
    p["s1"], p["b1"] = _make_bn_params(keys[1], channels)
    p["w2"] = 0.1 * jax.random.normal(keys[2], (3, 3, channels), jnp.float32)
    p["s2"], p["b2"] = _make_bn_params(keys[3], channels)
    p["w3"] = 0.1 * jax.random.normal(keys[4], (channels, channels), jnp.float32)
    p["s3"], p["b3"] = _make_bn_params(keys[5], channels)
    if stride != 1:
        p["w4"] = 0.1 * jax.random.normal(keys[6], (3, 3, in_channels), jnp.float32)
        p["s4"], p["b4"] = _make_bn_params(keys[7], in_channels)
        p["w5"] = 0.1 * jax.random.normal(keys[8], (in_channels, channels), jnp.float32)
        p["s5"], p["b5"] = _make_bn_params(keys[9], channels)
    return p


# -----------------------------------------------------------------------------
# Public forward (NCHW in/out, like the PyTorch module).
# -----------------------------------------------------------------------------
def basic_block_forward(params, x_nchw, *, in_channels, out_channels, stride,
                        dilation):
    n, cin, h, w = x_nchw.shape
    assert cin == in_channels
    cc = out_channels // 2
    c2 = out_channels
    d = dilation
    ho, wo = _out_hw(h, stride), _out_hw(w, stride)
    hw_o = ho * wo
    wlo = ((d + 7) // 8) * 8                    # sublane-aligned low-side W pad
    hp, wp = h + 2 * d, wlo + w + d
    out_dtype = x_nchw.dtype

    # NCHW -> NHWC (channels on lanes), activations in bf16 for the MXU and to
    # halve input HBM traffic.
    # TODO(synk): in a full network, hoist this transpose to the net boundary.
    x = jnp.transpose(x_nchw, (0, 2, 3, 1)).astype(jnp.bfloat16)
    f = _fold_block_params(params, stride)

    # Lane-dense output slab: pack k = 128//C pixel groups into the lane dim.
    use_slab = (128 % c2 == 0) and (hw_o % (128 // c2) == 0)
    if use_slab:
        k = 128 // c2
        rows = hw_o // k
        out_struct = jax.ShapeDtypeStruct((n, rows, 128), out_dtype)
        out_spec = pl.BlockSpec((1, rows, 128), lambda i: (i, 0, 0))
    else:
        # TODO(synk): general lane-dense packing when C doesn't divide 128.
        out_struct = jax.ShapeDtypeStruct((n, hw_o, c2), out_dtype)
        out_spec = pl.BlockSpec((1, hw_o, c2), lambda i: (i, 0, 0))

    cparams = pltpu.CompilerParams(
        dimension_semantics=("parallel",),       # images across TCs where possible
        vmem_limit_bytes=32 * 1024 * 1024,
    )
    # TODO(synk): add a spatial (row-band) parallel grid axis for v7x megacore.

    # Advisory cost estimate so XLA schedules the surrounding transposes sanely.
    item = jnp.dtype(out_dtype).itemsize
    flops = h * w * (cc if stride == 1 else cin) * cc + 9 * hw_o * cc + hw_o * cc * c2
    if stride == 1:
        flops += h * w * cc * c2
    else:
        flops += 9 * hw_o * cin + hw_o * cin * c2
    param_bytes = sum(int(v.size) * v.dtype.itemsize for v in f.values())
    cost = pl.CostEstimate(
        flops=int(2 * n * flops), transcendentals=0,
        bytes_accessed=int(n * h * w * cin * 2 + n * hw_o * c2 * item + param_bytes))

    if stride == 1:
        assert in_channels == out_channels
        kernel = functools.partial(_block_kernel_s1, h=h, w=w, cc=cc,
                                   dilation=d, wlo=wlo)
        out = pl.pallas_call(
            kernel,
            out_shape=out_struct,
            grid=(n,),
            in_specs=[
                pl.BlockSpec((1, h, w, in_channels), lambda i: (i, 0, 0, 0)),
                _rep_spec(f["a1"].shape), _rep_spec(f["b1"].shape),
                _rep_spec(f["w2"].shape), _rep_spec(f["a3"].shape),
                _rep_spec(f["c3"].shape), _rep_spec(f["e0"].shape),
            ],
            out_specs=out_spec,
            scratch_shapes=[pltpu.VMEM((hp, wp, cc), jnp.float32)],
            compiler_params=cparams,
            cost_estimate=cost,
        )(x, f["a1"], f["b1"], f["w2"], f["a3"], f["c3"], f["e0"])
    else:
        kernel = functools.partial(_block_kernel_ds, h=h, w=w, cin=in_channels,
                                   cc=cc, stride=stride, dilation=d, wlo=wlo)
        out = pl.pallas_call(
            kernel,
            out_shape=out_struct,
            grid=(n,),
            in_specs=[
                pl.BlockSpec((1, h, w, in_channels), lambda i: (i, 0, 0, 0)),
                _rep_spec(f["a1"].shape), _rep_spec(f["b1"].shape),
                _rep_spec(f["w2"].shape), _rep_spec(f["a3"].shape),
                _rep_spec(f["c3"].shape), _rep_spec(f["w4"].shape),
                _rep_spec(f["a5"].shape), _rep_spec(f["c5"].shape),
            ],
            out_specs=out_spec,
            scratch_shapes=[pltpu.VMEM((hp, wp, cc), jnp.float32),
                            pltpu.VMEM((hp, wp, in_channels), jnp.float32)],
            compiler_params=cparams,
            cost_estimate=cost,
        )(x, f["a1"], f["b1"], f["w2"], f["a3"], f["c3"],
          f["w4"], f["a5"], f["c5"])

    if use_slab:
        # Unpack the (rows, k, C) slab back to pixel-major (pixel = j*rows + q).
        out = jnp.transpose(out.reshape(n, rows, k, c2), (0, 2, 1, 3))
    out = out.reshape(n, ho, wo, c2)
    return jnp.transpose(out, (0, 3, 1, 2))     # NHWC -> NCHW


# -----------------------------------------------------------------------------
# Pure-JAX (non-Pallas) f32 reference for a numerical sanity check.
# -----------------------------------------------------------------------------
def _reference_block(params, x_nchw, *, in_channels, out_channels, stride,
                     dilation):
    cc = out_channels // 2
    x = jnp.transpose(x_nchw, (0, 2, 3, 1)).astype(jnp.float32)

    def pw(z, w, s, b):
        y = jnp.sum(z[..., :, None] * w[None, None, None, :, :], axis=-2)
        return jnp.maximum(y * s + b, 0.0)

    def dw(z, w, s, b, st):
        d = dilation
        zp = jnp.pad(z, ((0, 0), (d, d), (d, d), (0, 0)))
        h, wd = z.shape[1], z.shape[2]
        ho, wo = _out_hw(h, st), _out_hw(wd, st)
        acc = jnp.zeros((z.shape[0], ho, wo, z.shape[3]), jnp.float32)
        for kh in range(3):
            for kw in range(3):
                tap = zp[:, kh * d:kh * d + (ho - 1) * st + 1:st,
                         kw * d:kw * d + (wo - 1) * st + 1:st, :]
                acc = acc + tap * w[kh, kw, :]
        return acc * s + b

    def branch(z):
        z = pw(z, params["w1"], params["s1"], params["b1"])
        z = dw(z, params["w2"], params["s2"], params["b2"], stride)
        return pw(z, params["w3"], params["s3"], params["b3"])

    if stride == 1:
        y = jnp.concatenate([x[..., :cc], branch(x[..., cc:])], axis=-1)
    else:
        z0 = dw(x, params["w4"], params["s4"], params["b4"], stride)
        z0 = pw(z0, params["w5"], params["s5"], params["b5"])
        y = jnp.concatenate([z0, branch(x)], axis=-1)
    n, h, wd, c = y.shape
    y = y.reshape(n, h, wd, 2, c // 2).swapaxes(3, 4).reshape(n, h, wd, c)
    return jnp.transpose(y, (0, 3, 1, 2))


if __name__ == "__main__":
    key = jax.random.PRNGKey(0)
    kx, kp1, kp2 = jax.random.split(key, 3)

    N, C, H, W = 2, 8, 16, 16
    x = jax.random.normal(kx, (N, C, H, W), jnp.float32)

    # Tolerance covers bf16 matmul inputs (f32 accumulation) vs the f32 reference.
    TOL = 6e-2

    # stride=1 block (in_channels == out_channels)
    p1 = init_basic_block(kp1, C, C, stride=1)
    y1 = basic_block_forward(p1, x, in_channels=C, out_channels=C,
                             stride=1, dilation=1)
    jax.block_until_ready(y1)
    assert y1.shape == (N, C, H, W), y1.shape
    r1 = _reference_block(p1, x, in_channels=C, out_channels=C,
                          stride=1, dilation=1)
    err1 = float(jnp.max(jnp.abs(y1 - r1)))
    assert err1 < TOL, f"stride=1 mismatch, max abs err {err1}"

    # stride=2 downsampling block (out_channels = 2 * in_channels)
    p2 = init_basic_block(kp2, C, 2 * C, stride=2)
    y2 = basic_block_forward(p2, x, in_channels=C, out_channels=2 * C,
                             stride=2, dilation=1)
    jax.block_until_ready(y2)
    assert y2.shape == (N, 2 * C, H // 2, W // 2), y2.shape
    r2 = _reference_block(p2, x, in_channels=C, out_channels=2 * C,
                          stride=2, dilation=1)
    err2 = float(jnp.max(jnp.abs(y2 - r2)))
    assert err2 < TOL, f"stride=2 mismatch, max abs err {err2}"

    print("KERNEL_OK")
</pallas_src>

<mosaic_0001>
module attributes {stable_mosaic.version = 11 : i64} {
  func.func @_block_kernel_s1(%arg0: i32, %arg1: memref<1x16x16x8xbf16, #tpu.memory_space<vmem>>, %arg2: memref<4x4xbf16, #tpu.memory_space<vmem>>, %arg3: memref<1x4xf32, #tpu.memory_space<vmem>>, %arg4: memref<9x4xf32, #tpu.memory_space<vmem>>, %arg5: memref<4x8xbf16, #tpu.memory_space<vmem>>, %arg6: memref<1x8xf32, #tpu.memory_space<vmem>>, %arg7: memref<4x8xbf16, #tpu.memory_space<vmem>>, %arg8: memref<1x16x128xf32, #tpu.memory_space<vmem>>, %arg9: memref<18x25x4xf32, #tpu.memory_space<vmem>>) attributes {dimension_semantics = [#tpu.dimension_semantics<parallel>], iteration_bounds = array<i64: 2>, scalar_prefetch = 0 : i64, scratch_operands = 1 : i64, tpu.core_type = #tpu.core_type<tc>, window_params = [{transform_indices = @transform_0, window_bounds = array<i64: 1, 16, 16, 8>}, {pipeline_mode = #tpu.pipeline_mode<synchronous>, transform_indices = @transform_1, window_bounds = array<i64: 4, 4>}, {pipeline_mode = #tpu.pipeline_mode<synchronous>, transform_indices = @transform_2, window_bounds = array<i64: 1, 4>}, {pipeline_mode = #tpu.pipeline_mode<synchronous>, transform_indices = @transform_3, window_bounds = array<i64: 9, 4>}, {pipeline_mode = #tpu.pipeline_mode<synchronous>, transform_indices = @transform_4, window_bounds = array<i64: 4, 8>}, {pipeline_mode = #tpu.pipeline_mode<synchronous>, transform_indices = @transform_5, window_bounds = array<i64: 1, 8>}, {pipeline_mode = #tpu.pipeline_mode<synchronous>, transform_indices = @transform_6, window_bounds = array<i64: 4, 8>}, {transform_indices = @transform_7, window_bounds = array<i64: 1, 16, 128>}]} {
    %c0 = arith.constant 0 : index
    %c0_0 = arith.constant 0 : index
    %c0_1 = arith.constant 0 : index
    %c0_2 = arith.constant 0 : index
    %0 = vector.load %arg1[%c0, %c0_0, %c0_1, %c0_2] : memref<1x16x16x8xbf16, #tpu.memory_space<vmem>>, vector<1x16x16x8xbf16>
    %1 = vector.shape_cast %0 : vector<1x16x16x8xbf16> to vector<16x16x8xbf16>
    %2 = vector.extract_strided_slice %1 {offsets = [0, 0, 0], sizes = [16, 16, 4], strides = [1, 1, 1]} : vector<16x16x8xbf16> to vector<16x16x4xbf16>
    %3 = vector.extract_strided_slice %1 {offsets = [0, 0, 4], sizes = [16, 16, 4], strides = [1, 1, 1]} : vector<16x16x8xbf16> to vector<16x16x4xbf16>
    %4 = vector.shape_cast %3 : vector<16x16x4xbf16> to vector<256x4xbf16>
    %c0_3 = arith.constant 0 : index
    %c0_4 = arith.constant 0 : index
    %5 = vector.load %arg2[%c0_3, %c0_4] : memref<4x4xbf16, #tpu.memory_space<vmem>>, vector<4x4xbf16>
    %cst = arith.constant dense<0.000000e+00> : vector<256x4xf32>
    %6 = tpu.matmul %4, %5, %cst {dimension_numbers = #tpu.dot_dimension_numbers<[1], [0], [0], [1], [0, 0, 1, 1], [], []>} : vector<256x4xbf16>, vector<4x4xbf16>, vector<256x4xf32> -> vector<256x4xf32>
    %c0_5 = arith.constant 0 : index
    %c0_6 = arith.constant 0 : index
    %7 = vector.load %arg3[%c0_5, %c0_6] : memref<1x4xf32, #tpu.memory_space<vmem>>, vector<1x4xf32>
    %8 = vector.broadcast %7 : vector<1x4xf32> to vector<256x4xf32>
    %9 = arith.addf %6, %8 : vector<256x4xf32>
    %cst_7 = arith.constant 0.000000e+00 : f32
    %10 = vector.broadcast %cst_7 : f32 to vector<256x4xf32>
    %11 = arith.maximumf %9, %10 : vector<256x4xf32>
    %cst_8 = arith.constant 0.000000e+00 : f32
    %12 = vector.broadcast %cst_8 : f32 to vector<1x18x4xf32>
    %c0_9 = arith.constant 0 : index
    %c7 = arith.constant 7 : index
    %c0_10 = arith.constant 0 : index
    %13 = vector.load %arg9[%c0_9, %c7, %c0_10] : memref<18x25x4xf32, #tpu.memory_space<vmem>>, vector<1x18x4xf32>
    tpu.vector_store %arg9[%c0_9, %c7, %c0_10], %12 {strides = array<i32>} : memref<18x25x4xf32, #tpu.memory_space<vmem>>, vector<1x18x4xf32>,
    %c17 = arith.constant 17 : index
    %c7_11 = arith.constant 7 : index
    %c0_12 = arith.constant 0 : index
    %14 = vector.load %arg9[%c17, %c7_11, %c0_12] : memref<18x25x4xf32, #tpu.memory_space<vmem>>, vector<1x18x4xf32>
    tpu.vector_store %arg9[%c17, %c7_11, %c0_12], %12 {strides = array<i32>} : memref<18x25x4xf32, #tpu.memory_space<vmem>>, vector<1x18x4xf32>,
    %cst_13 = arith.constant 0.000000e+00 : f32
    %15 = vector.broadcast %cst_13 : f32 to vector<16x1x4xf32>
    %c1 = arith.constant 1 : index
    %c7_14 = arith.constant 7 : index
    %c0_15 = arith.constant 0 : index
    %16 = vector.load %arg9[%c1, %c7_14, %c0_15] : memref<18x25x4xf32, #tpu.memory_space<vmem>>, vector<16x1x4xf32>
    tpu.vector_store %arg9[%c1, %c7_14, %c0_15], %15 {strides = array<i32>} : memref<18x25x4xf32, #tpu.memory_space<vmem>>, vector<16x1x4xf32>,
    %c1_16 = arith.constant 1 : index
    %c24 = arith.constant 24 : index
    %c0_17 = arith.constant 0 : index
    %17 = vector.load %arg9[%c1_16, %c24, %c0_17] : memref<18x25x4xf32, #tpu.memory_space<vmem>>, vector<16x1x4xf32>
    tpu.vector_store %arg9[%c1_16, %c24, %c0_17], %15 {strides = array<i32>} : memref<18x25x4xf32, #tpu.memory_space<vmem>>, vector<16x1x4xf32>,
    %18 = vector.shape_cast %11 : vector<256x4xf32> to vector<16x16x4xf32>
    %c1_18 = arith.constant 1 : index
    %c8 = arith.constant 8 : index
    %c0_19 = arith.constant 0 : index
    %19 = vector.load %arg9[%c1_18, %c8, %c0_19] : memref<18x25x4xf32, #tpu.memory_space<vmem>>, vector<16x16x4xf32>
    tpu.vector_store %arg9[%c1_18, %c8, %c0_19], %18 {strides = array<i32>} : memref<18x25x4xf32, #tpu.memory_space<vmem>>, vector<16x16x4xf32>,
    %c0_20 = arith.constant 0 : index
    %c0_21 = arith.constant 0 : index
    %20 = vector.load %arg4[%c0_20, %c0_21] : memref<9x4xf32, #tpu.memory_space<vmem>>, vector<9x4xf32>
    %21 = vector.shape_cast %20 : vector<9x4xf32> to vector<9x1x1x4xf32>
    %c0_22 = arith.constant 0 : index
    %c7_23 = arith.constant 7 : index
    %c0_24 = arith.constant 0 : index
    %22 = vector.load %arg9[%c0_22, %c7_23, %c0_24] : memref<18x25x4xf32, #tpu.memory_space<vmem>>, vector<16x16x4xf32>
    %23 = vector.extract_strided_slice %21 {offsets = [0, 0, 0, 0], sizes = [1, 1, 1, 4], strides = [1, 1, 1, 1]} : vector<9x1x1x4xf32> to vector<1x1x1x4xf32>
    %24 = vector.shape_cast %23 : vector<1x1x1x4xf32> to vector<1x1x4xf32>
    %25 = vector.broadcast %24 : vector<1x1x4xf32> to vector<16x16x4xf32>
    %26 = arith.mulf %22, %25 : vector<16x16x4xf32>
    %c0_25 = arith.constant 0 : index
    %c8_26 = arith.constant 8 : index
    %c0_27 = arith.constant 0 : index
    %27 = vector.load %arg9[%c0_25, %c8_26, %c0_27] : memref<18x25x4xf32, #tpu.memory_space<vmem>>, vector<16x16x4xf32>
    %28 = vector.extract_strided_slice %21 {offsets = [1, 0, 0, 0], sizes = [1, 1, 1, 4], strides = [1, 1, 1, 1]} : vector<9x1x1x4xf32> to vector<1x1x1x4xf32>
    %29 = vector.shape_cast %28 : vector<1x1x1x4xf32> to vector<1x1x4xf32>
    %30 = vector.broadcast %29 : vector<1x1x4xf32> to vector<16x16x4xf32>
    %31 = arith.mulf %27, %30 : vector<16x16x4xf32>
    %32 = arith.addf %26, %31 : vector<16x16x4xf32>
    %c0_28 = arith.constant 0 : index
    %c9 = arith.constant 9 : index
    %c0_29 = arith.constant 0 : index
    %33 = vector.load %arg9[%c0_28, %c9, %c0_29] : memref<18x25x4xf32, #tpu.memory_space<vmem>>, vector<16x16x4xf32>
    %34 = vector.extract_strided_slice %21 {offsets = [2, 0, 0, 0], sizes = [1, 1, 1, 4], strides = [1, 1, 1, 1]} : vector<9x1x1x4xf32> to vector<1x1x1x4xf32>
    %35 = vector.shape_cast %34 : vector<1x1x1x4xf32> to vector<1x1x4xf32>
    %36 = vector.broadcast %35 : vector<1x1x4xf32> to vector<16x16x4xf32>
    %37 = arith.mulf %33, %36 : vector<16x16x4xf32>
    %38 = arith.addf %32, %37 : vector<16x16x4xf32>
    %c1_30 = arith.constant 1 : index
    %c7_31 = arith.constant 7 : index
    %c0_32 = arith.constant 0 : index
    %39 = vector.load %arg9[%c1_30, %c7_31, %c0_32] : memref<18x25x4xf32, #tpu.memory_space<vmem>>, vector<16x16x4xf32>
    %40 = vector.extract_strided_slice %21 {offsets = [3, 0, 0, 0], sizes = [1, 1, 1, 4], strides = [1, 1, 1, 1]} : vector<9x1x1x4xf32> to vector<1x1x1x4xf32>
    %41 = vector.shape_cast %40 : vector<1x1x1x4xf32> to vector<1x1x4xf32>
    %42 = vector.broadcast %41 : vector<1x1x4xf32> to vector<16x16x4xf32>
    %43 = arith.mulf %39, %42 : vector<16x16x4xf32>
    %44 = arith.addf %38, %43 : vector<16x16x4xf32>
    %c1_33 = arith.constant 1 : index
    %c8_34 = arith.constant 8 : index
    %c0_35 = arith.constant 0 : index
    %45 = vector.load %arg9[%c1_33, %c8_34, %c0_35] : memref<18x25x4xf32, #tpu.memory_space<vmem>>, vector<16x16x4xf32>
    %46 = vector.extract_strided_slice %21 {offsets = [4, 0, 0, 0], sizes = [1, 1, 1, 4], strides = [1, 1, 1, 1]} : vector<9x1x1x4xf32> to vector<1x1x1x4xf32>
    %47 = vector.shape_cast %46 : vector<1x1x1x4xf32> to vector<1x1x4xf32>
    %48 = vector.broadcast %47 : vector<1x1x4xf32> to vector<16x16x4xf32>
    %49 = arith.mulf %45, %48 : vector<16x16x4xf32>
    %50 = arith.addf %44, %49 : vector<16x16x4xf32>
    %c1_36 = arith.constant 1 : index
    %c9_37 = arith.constant 9 : index
    %c0_38 = arith.constant 0 : index
    %51 = vector.load %arg9[%c1_36, %c9_37, %c0_38] : memref<18x25x4xf32, #tpu.memory_space<vmem>>, vector<16x16x4xf32>
    %52 = vector.extract_strided_slice %21 {offsets = [5, 0, 0, 0], sizes = [1, 1, 1, 4], strides = [1, 1, 1, 1]} : vector<9x1x1x4xf32> to vector<1x1x1x4xf32>
    %53 = vector.shape_cast %52 : vector<1x1x1x4xf32> to vector<1x1x4xf32>
    %54 = vector.broadcast %53 : vector<1x1x4xf32> to vector<16x16x4xf32>
    %55 = arith.mulf %51, %54 : vector<16x16x4xf32>
    %56 = arith.addf %50, %55 : vector<16x16x4xf32>
    %c2 = arith.constant 2 : index
    %c7_39 = arith.constant 7 : index
    %c0_40 = arith.constant 0 : index
    %57 = vector.load %arg9[%c2, %c7_39, %c0_40] : memref<18x25x4xf32, #tpu.memory_space<vmem>>, vector<16x16x4xf32>
    %58 = vector.extract_strided_slice %21 {offsets = [6, 0, 0, 0], sizes = [1, 1, 1, 4], strides = [1, 1, 1, 1]} : vector<9x1x1x4xf32> to vector<1x1x1x4xf32>
    %59 = vector.shape_cast %58 : vector<1x1x1x4xf32> to vector<1x1x4xf32>
    %60 = vector.broadcast %59 : vector<1x1x4xf32> to vector<16x16x4xf32>
    %61 = arith.mulf %57, %60 : vector<16x16x4xf32>
    %62 = arith.addf %56, %61 : vector<16x16x4xf32>
    %c2_41 = arith.constant 2 : index
    %c8_42 = arith.constant 8 : index
    %c0_43 = arith.constant 0 : index
    %63 = vector.load %arg9[%c2_41, %c8_42, %c0_43] : memref<18x25x4xf32, #tpu.memory_space<vmem>>, vector<16x16x4xf32>
    %64 = vector.extract_strided_slice %21 {offsets = [7, 0, 0, 0], sizes = [1, 1, 1, 4], strides = [1, 1, 1, 1]} : vector<9x1x1x4xf32> to vector<1x1x1x4xf32>
    %65 = vector.shape_cast %64 : vector<1x1x1x4xf32> to vector<1x1x4xf32>
    %66 = vector.broadcast %65 : vector<1x1x4xf32> to vector<16x16x4xf32>
    %67 = arith.mulf %63, %66 : vector<16x16x4xf32>
    %68 = arith.addf %62, %67 : vector<16x16x4xf32>
    %c2_44 = arith.constant 2 : index
    %c9_45 = arith.constant 9 : index
    %c0_46 = arith.constant 0 : index
    %69 = vector.load %arg9[%c2_44, %c9_45, %c0_46] : memref<18x25x4xf32, #tpu.memory_space<vmem>>, vector<16x16x4xf32>
    %70 = vector.extract_strided_slice %21 {offsets = [8, 0, 0, 0], sizes = [1, 1, 1, 4], strides = [1, 1, 1, 1]} : vector<9x1x1x4xf32> to vector<1x1x1x4xf32>
    %71 = vector.shape_cast %70 : vector<1x1x1x4xf32> to vector<1x1x4xf32>
    %72 = vector.broadcast %71 : vector<1x1x4xf32> to vector<16x16x4xf32>
    %73 = arith.mulf %69, %72 : vector<16x16x4xf32>
    %74 = arith.addf %68, %73 : vector<16x16x4xf32>
    %75 = vector.shape_cast %74 : vector<16x16x4xf32> to vector<256x4xf32>
    %76 = arith.truncf %75 : vector<256x4xf32> to vector<256x4xbf16>
    %c0_47 = arith.constant 0 : index
    %c0_48 = arith.constant 0 : index
    %77 = vector.load %arg5[%c0_47, %c0_48] : memref<4x8xbf16, #tpu.memory_space<vmem>>, vector<4x8xbf16>
    %cst_49 = arith.constant dense<0.000000e+00> : vector<256x8xf32>
    %78 = tpu.matmul %76, %77, %cst_49 {dimension_numbers = #tpu.dot_dimension_numbers<[1], [0], [0], [1], [0, 0, 1, 1], [], []>} : vector<256x4xbf16>, vector<4x8xbf16>, vector<256x8xf32> -> vector<256x8xf32>
    %c0_50 = arith.constant 0 : index
    %c0_51 = arith.constant 0 : index
    %79 = vector.load %arg6[%c0_50, %c0_51] : memref<1x8xf32, #tpu.memory_space<vmem>>, vector<1x8xf32>
    %80 = vector.broadcast %79 : vector<1x8xf32> to vector<256x8xf32>
    %81 = arith.addf %78, %80 : vector<256x8xf32>
    %cst_52 = arith.constant 0.000000e+00 : f32
    %82 = vector.broadcast %cst_52 : f32 to vector<256x8xf32>
    %83 = arith.maximumf %81, %82 : vector<256x8xf32>
    %84 = vector.shape_cast %2 : vector<16x16x4xbf16> to vector<256x4xbf16>
    %c0_53 = arith.constant 0 : index
    %c0_54 = arith.constant 0 : index
    %85 = vector.load %arg7[%c0_53, %c0_54] : memref<4x8xbf16, #tpu.memory_space<vmem>>, vector<4x8xbf16>
    %cst_55 = arith.constant dense<0.000000e+00> : vector<256x8xf32>
    %86 = tpu.matmul %84, %85, %cst_55 {dimension_numbers = #tpu.dot_dimension_numbers<[1], [0], [0], [1], [0, 0, 1, 1], [], []>} : vector<256x4xbf16>, vector<4x8xbf16>, vector<256x8xf32> -> vector<256x8xf32>
    %87 = arith.addf %86, %83 : vector<256x8xf32>
    %88 = vector.extract_strided_slice %87 {offsets = [0, 0], sizes = [16, 8], strides = [1, 1]} : vector<256x8xf32> to vector<16x8xf32>
    %c0_56 = arith.constant 0 : index
    %c0_57 = arith.constant 0 : index
    %c0_58 = arith.constant 0 : index
    %89 = vector.load %arg8[%c0_56, %c0_57, %c0_58] : memref<1x16x128xf32, #tpu.memory_space<vmem>>, vector<1x16x8xf32>
    %90 = vector.shape_cast %89 : vector<1x16x8xf32> to vector<16x8xf32>
    %91 = vector.shape_cast %88 : vector<16x8xf32> to vector<1x16x8xf32>
    tpu.vector_store %arg8[%c0_56, %c0_57, %c0_58], %91 {strides = array<i32>} : memref<1x16x128xf32, #tpu.memory_space<vmem>>, vector<1x16x8xf32>,
    %92 = vector.extract_strided_slice %87 {offsets = [16, 0], sizes = [16, 8], strides = [1, 1]} : vector<256x8xf32> to vector<16x8xf32>
    %c0_59 = arith.constant 0 : index
    %c0_60 = arith.constant 0 : index
    %c8_61 = arith.constant 8 : index
    %93 = vector.load %arg8[%c0_59, %c0_60, %c8_61] : memref<1x16x128xf32, #tpu.memory_space<vmem>>, vector<1x16x8xf32>
    %94 = vector.shape_cast %93 : vector<1x16x8xf32> to vector<16x8xf32>
    %95 = vector.shape_cast %92 : vector<16x8xf32> to vector<1x16x8xf32>
    tpu.vector_store %arg8[%c0_59, %c0_60, %c8_61], %95 {strides = array<i32>} : memref<1x16x128xf32, #tpu.memory_space<vmem>>, vector<1x16x8xf32>,
    %96 = vector.extract_strided_slice %87 {offsets = [32, 0], sizes = [16, 8], strides = [1, 1]} : vector<256x8xf32> to vector<16x8xf32>
    %c0_62 = arith.constant 0 : index
    %c0_63 = arith.constant 0 : index
    %c16 = arith.constant 16 : index
    %97 = vector.load %arg8[%c0_62, %c0_63, %c16] : memref<1x16x128xf32, #tpu.memory_space<vmem>>, vector<1x16x8xf32>
    %98 = vector.shape_cast %97 : vector<1x16x8xf32> to vector<16x8xf32>
    %99 = vector.shape_cast %96 : vector<16x8xf32> to vector<1x16x8xf32>
    tpu.vector_store %arg8[%c0_62, %c0_63, %c16], %99 {strides = array<i32>} : memref<1x16x128xf32, #tpu.memory_space<vmem>>, vector<1x16x8xf32>,
    %100 = vector.extract_strided_slice %87 {offsets = [48, 0], sizes = [16, 8], strides = [1, 1]} : vector<256x8xf32> to vector<16x8xf32>
    %c0_64 = arith.constant 0 : index
    %c0_65 = arith.constant 0 : index
    %c24_66 = arith.constant 24 : index
    %101 = vector.load %arg8[%c0_64, %c0_65, %c24_66] : memref<1x16x128xf32, #tpu.memory_space<vmem>>, vector<1x16x8xf32>
    %102 = vector.shape_cast %101 : vector<1x16x8xf32> to vector<16x8xf32>
    %103 = vector.shape_cast %100 : vector<16x8xf32> to vector<1x16x8xf32>
    tpu.vector_store %arg8[%c0_64, %c0_65, %c24_66], %103 {strides = array<i32>} : memref<1x16x128xf32, #tpu.memory_space<vmem>>, vector<1x16x8xf32>,
    %104 = vector.extract_strided_slice %87 {offsets = [64, 0], sizes = [16, 8], strides = [1, 1]} : vector<256x8xf32> to vector<16x8xf32>
    %c0_67 = arith.constant 0 : index
    %c0_68 = arith.constant 0 : index
    %c32 = arith.constant 32 : index
    %105 = vector.load %arg8[%c0_67, %c0_68, %c32] : memref<1x16x128xf32, #tpu.memory_space<vmem>>, vector<1x16x8xf32>
    %106 = vector.shape_cast %105 : vector<1x16x8xf32> to vector<16x8xf32>
    %107 = vector.shape_cast %104 : vector<16x8xf32> to vector<1x16x8xf32>
    tpu.vector_store %arg8[%c0_67, %c0_68, %c32], %107 {strides = array<i32>} : memref<1x16x128xf32, #tpu.memory_space<vmem>>, vector<1x16x8xf32>,
    %108 = vector.extract_strided_slice %87 {offsets = [80, 0], sizes = [16, 8], strides = [1, 1]} : vector<256x8xf32> to vector<16x8xf32>
    %c0_69 = arith.constant 0 : index
    %c0_70 = arith.constant 0 : index
    %c40 = arith.constant 40 : index
    %109 = vector.load %arg8[%c0_69, %c0_70, %c40] : memref<1x16x128xf32, #tpu.memory_space<vmem>>, vector<1x16x8xf32>
    %110 = vector.shape_cast %109 : vector<1x16x8xf32> to vector<16x8xf32>
    %111 = vector.shape_cast %108 : vector<16x8xf32> to vector<1x16x8xf32>
    tpu.vector_store %arg8[%c0_69, %c0_70, %c40], %111 {strides = array<i32>} : memref<1x16x128xf32, #tpu.memory_space<vmem>>, vector<1x16x8xf32>,
    %112 = vector.extract_strided_slice %87 {offsets = [96, 0], sizes = [16, 8], strides = [1, 1]} : vector<256x8xf32> to vector<16x8xf32>
    %c0_71 = arith.constant 0 : index
    %c0_72 = arith.constant 0 : index
    %c48 = arith.constant 48 : index
    %113 = vector.load %arg8[%c0_71, %c0_72, %c48] : memref<1x16x128xf32, #tpu.memory_space<vmem>>, vector<1x16x8xf32>
    %114 = vector.shape_cast %113 : vector<1x16x8xf32> to vector<16x8xf32>
    %115 = vector.shape_cast %112 : vector<16x8xf32> to vector<1x16x8xf32>
    tpu.vector_store %arg8[%c0_71, %c0_72, %c48], %115 {strides = array<i32>} : memref<1x16x128xf32, #tpu.memory_space<vmem>>, vector<1x16x8xf32>,
    %116 = vector.extract_strided_slice %87 {offsets = [112, 0], sizes = [16, 8], strides = [1, 1]} : vector<256x8xf32> to vector<16x8xf32>
    %c0_73 = arith.constant 0 : index
    %c0_74 = arith.constant 0 : index
    %c56 = arith.constant 56 : index
    %117 = vector.load %arg8[%c0_73, %c0_74, %c56] : memref<1x16x128xf32, #tpu.memory_space<vmem>>, vector<1x16x8xf32>
    %118 = vector.shape_cast %117 : vector<1x16x8xf32> to vector<16x8xf32>
    %119 = vector.shape_cast %116 : vector<16x8xf32> to vector<1x16x8xf32>
    tpu.vector_store %arg8[%c0_73, %c0_74, %c56], %119 {strides = array<i32>} : memref<1x16x128xf32, #tpu.memory_space<vmem>>, vector<1x16x8xf32>,
    %120 = vector.extract_strided_slice %87 {offsets = [128, 0], sizes = [16, 8], strides = [1, 1]} : vector<256x8xf32> to vector<16x8xf32>
    %c0_75 = arith.constant 0 : index
    %c0_76 = arith.constant 0 : index
    %c64 = arith.constant 64 : index
    %121 = vector.load %arg8[%c0_75, %c0_76, %c64] : memref<1x16x128xf32, #tpu.memory_space<vmem>>, vector<1x16x8xf32>
    %122 = vector.shape_cast %121 : vector<1x16x8xf32> to vector<16x8xf32>
    %123 = vector.shape_cast %120 : vector<16x8xf32> to vector<1x16x8xf32>
    tpu.vector_store %arg8[%c0_75, %c0_76, %c64], %123 {strides = array<i32>} : memref<1x16x128xf32, #tpu.memory_space<vmem>>, vector<1x16x8xf32>,
    %124 = vector.extract_strided_slice %87 {offsets = [144, 0], sizes = [16, 8], strides = [1, 1]} : vector<256x8xf32> to vector<16x8xf32>
    %c0_77 = arith.constant 0 : index
    %c0_78 = arith.constant 0 : index
    %c72 = arith.constant 72 : index
    %125 = vector.load %arg8[%c0_77, %c0_78, %c72] : memref<1x16x128xf32, #tpu.memory_space<vmem>>, vector<1x16x8xf32>
    %126 = vector.shape_cast %125 : vector<1x16x8xf32> to vector<16x8xf32>
    %127 = vector.shape_cast %124 : vector<16x8xf32> to vector<1x16x8xf32>
    tpu.vector_store %arg8[%c0_77, %c0_78, %c72], %127 {strides = array<i32>} : memref<1x16x128xf32, #tpu.memory_space<vmem>>, vector<1x16x8xf32>,
    %128 = vector.extract_strided_slice %87 {offsets = [160, 0], sizes = [16, 8], strides = [1, 1]} : vector<256x8xf32> to vector<16x8xf32>
    %c0_79 = arith.constant 0 : index
    %c0_80 = arith.constant 0 : index
    %c80 = arith.constant 80 : index
    %129 = vector.load %arg8[%c0_79, %c0_80, %c80] : memref<1x16x128xf32, #tpu.memory_space<vmem>>, vector<1x16x8xf32>
    %130 = vector.shape_cast %129 : vector<1x16x8xf32> to vector<16x8xf32>
    %131 = vector.shape_cast %128 : vector<16x8xf32> to vector<1x16x8xf32>
    tpu.vector_store %arg8[%c0_79, %c0_80, %c80], %131 {strides = array<i32>} : memref<1x16x128xf32, #tpu.memory_space<vmem>>, vector<1x16x8xf32>,
    %132 = vector.extract_strided_slice %87 {offsets = [176, 0], sizes = [16, 8], strides = [1, 1]} : vector<256x8xf32> to vector<16x8xf32>
    %c0_81 = arith.constant 0 : index
    %c0_82 = arith.constant 0 : index
    %c88 = arith.constant 88 : index
    %133 = vector.load %arg8[%c0_81, %c0_82, %c88] : memref<1x16x128xf32, #tpu.memory_space<vmem>>, vector<1x16x8xf32>
    %134 = vector.shape_cast %133 : vector<1x16x8xf32> to vector<16x8xf32>
    %135 = vector.shape_cast %132 : vector<16x8xf32> to vector<1x16x8xf32>
    tpu.vector_store %arg8[%c0_81, %c0_82, %c88], %135 {strides = array<i32>} : memref<1x16x128xf32, #tpu.memory_space<vmem>>, vector<1x16x8xf32>,
    %136 = vector.extract_strided_slice %87 {offsets = [192, 0], sizes = [16, 8], strides = [1, 1]} : vector<256x8xf32> to vector<16x8xf32>
    %c0_83 = arith.constant 0 : index
    %c0_84 = arith.constant 0 : index
    %c96 = arith.constant 96 : index
    %137 = vector.load %arg8[%c0_83, %c0_84, %c96] : memref<1x16x128xf32, #tpu.memory_space<vmem>>, vector<1x16x8xf32>
    %138 = vector.shape_cast %137 : vector<1x16x8xf32> to vector<16x8xf32>
    %139 = vector.shape_cast %136 : vector<16x8xf32> to vector<1x16x8xf32>
    tpu.vector_store %arg8[%c0_83, %c0_84, %c96], %139 {strides = array<i32>} : memref<1x16x128xf32, #tpu.memory_space<vmem>>, vector<1x16x8xf32>,
    %140 = vector.extract_strided_slice %87 {offsets = [208, 0], sizes = [16, 8], strides = [1, 1]} : vector<256x8xf32> to vector<16x8xf32>
    %c0_85 = arith.constant 0 : index
    %c0_86 = arith.constant 0 : index
    %c104 = arith.constant 104 : index
    %141 = vector.load %arg8[%c0_85, %c0_86, %c104] : memref<1x16x128xf32, #tpu.memory_space<vmem>>, vector<1x16x8xf32>
    %142 = vector.shape_cast %141 : vector<1x16x8xf32> to vector<16x8xf32>
    %143 = vector.shape_cast %140 : vector<16x8xf32> to vector<1x16x8xf32>
    tpu.vector_store %arg8[%c0_85, %c0_86, %c104], %143 {strides = array<i32>} : memref<1x16x128xf32, #tpu.memory_space<vmem>>, vector<1x16x8xf32>,
    %144 = vector.extract_strided_slice %87 {offsets = [224, 0], sizes = [16, 8], strides = [1, 1]} : vector<256x8xf32> to vector<16x8xf32>
    %c0_87 = arith.constant 0 : index
    %c0_88 = arith.constant 0 : index
    %c112 = arith.constant 112 : index
    %145 = vector.load %arg8[%c0_87, %c0_88, %c112] : memref<1x16x128xf32, #tpu.memory_space<vmem>>, vector<1x16x8xf32>
    %146 = vector.shape_cast %145 : vector<1x16x8xf32> to vector<16x8xf32>
    %147 = vector.shape_cast %144 : vector<16x8xf32> to vector<1x16x8xf32>
    tpu.vector_store %arg8[%c0_87, %c0_88, %c112], %147 {strides = array<i32>} : memref<1x16x128xf32, #tpu.memory_space<vmem>>, vector<1x16x8xf32>,
    %148 = vector.extract_strided_slice %87 {offsets = [240, 0], sizes = [16, 8], strides = [1, 1]} : vector<256x8xf32> to vector<16x8xf32>
    %c0_89 = arith.constant 0 : index
    %c0_90 = arith.constant 0 : index
    %c120 = arith.constant 120 : index
    %149 = vector.load %arg8[%c0_89, %c0_90, %c120] : memref<1x16x128xf32, #tpu.memory_space<vmem>>, vector<1x16x8xf32>
    %150 = vector.shape_cast %149 : vector<1x16x8xf32> to vector<16x8xf32>
    %151 = vector.shape_cast %148 : vector<16x8xf32> to vector<1x16x8xf32>
    tpu.vector_store %arg8[%c0_89, %c0_90, %c120], %151 {strides = array<i32>} : memref<1x16x128xf32, #tpu.memory_space<vmem>>, vector<1x16x8xf32>,
    return
  }
  func.func @transform_0(%arg0: i32) -> (i32, i32, i32, i32) {
    %c0_i32 = arith.constant 0 : i32
    %c0_i32_0 = arith.constant 0 : i32
    %c0_i32_1 = arith.constant 0 : i32
    %c0_i32_2 = arith.constant 0 : i32
    return %arg0, %c0_i32, %c0_i32_0, %c0_i32_1 : i32, i32, i32, i32
  }
  func.func @transform_1(%arg0: i32) -> (i32, i32) {
    %c0_i32 = arith.constant 0 : i32
    %c0_i32_0 = arith.constant 0 : i32
    %c0_i32_1 = arith.constant 0 : i32
    return %c0_i32, %c0_i32_0 : i32, i32
  }
  func.func @transform_2(%arg0: i32) -> (i32, i32) {
    %c0_i32 = arith.constant 0 : i32
    %c0_i32_0 = arith.constant 0 : i32
    %c0_i32_1 = arith.constant 0 : i32
    return %c0_i32, %c0_i32_0 : i32, i32
  }
  func.func @transform_3(%arg0: i32) -> (i32, i32) {
    %c0_i32 = arith.constant 0 : i32
    %c0_i32_0 = arith.constant 0 : i32
    %c0_i32_1 = arith.constant 0 : i32
    return %c0_i32, %c0_i32_0 : i32, i32
  }
  func.func @transform_4(%arg0: i32) -> (i32, i32) {
    %c0_i32 = arith.constant 0 : i32
    %c0_i32_0 = arith.constant 0 : i32
    %c0_i32_1 = arith.constant 0 : i32
    return %c0_i32, %c0_i32_0 : i32, i32
  }
  func.func @transform_5(%arg0: i32) -> (i32, i32) {
    %c0_i32 = arith.constant 0 : i32
    %c0_i32_0 = arith.constant 0 : i32
    %c0_i32_1 = arith.constant 0 : i32
    return %c0_i32, %c0_i32_0 : i32, i32
  }
  func.func @transform_6(%arg0: i32) -> (i32, i32) {
    %c0_i32 = arith.constant 0 : i32
    %c0_i32_0 = arith.constant 0 : i32
    %c0_i32_1 = arith.constant 0 : i32
    return %c0_i32, %c0_i32_0 : i32, i32
  }
  func.func @transform_7(%arg0: i32) -> (i32, i32, i32) {
    %c0_i32 = arith.constant 0 : i32
    %c0_i32_0 = arith.constant 0 : i32
    %c0_i32_1 = arith.constant 0 : i32
    return %arg0, %c0_i32, %c0_i32_0 : i32, i32, i32
  }
}

</mosaic_0001>

<llo_original>
// kernel: tpu_custom_call.1
$region0: #{tpu_custom_call.1}
  #allocation0 [shape = 'u32[]', space=smem, size = 0x4, offset = 0x4, fixed_abs, tag = 'smem constant byte address 0x4 - core index']
  #allocation1 [shape = 'u32[72,128]{1,0:T(1,128)}', space=vmem, size = 0x9000, scoped, tag = 'internal scratch']
  #allocation2 [shape = 'f32[18,25,4]{2,1,0:T(8,128)}', space=vmem, size = 0x48000, scoped, tag = 'scratch operand']
  %s0 = inlined_call_operand.vmem [shape: bf16[2,16,16,8], index: 0, kind: input, shape index: {}]
  %s1 = inlined_call_operand.vmem [shape: bf16[4,4], index: 1, kind: input, shape index: {}]
  %s2 = inlined_call_operand.vmem [shape: f32[1,4], index: 2, kind: input, shape index: {}]
  %s3 = inlined_call_operand.vmem [shape: f32[9,4], index: 3, kind: input, shape index: {}]
  %s4 = inlined_call_operand.vmem [shape: bf16[4,8], index: 4, kind: input, shape index: {}]
  %s5 = inlined_call_operand.vmem [shape: f32[1,8], index: 5, kind: input, shape index: {}]
  %s6 = inlined_call_operand.vmem [shape: bf16[4,8], index: 6, kind: input, shape index: {}]
  %s7 = inlined_call_operand.hbm [shape: f32[2,16,128], index: 7, kind: output, shape index: {}]
  %s8 = sld [smem:[#allocation0]]
  $region61: #{tpu_custom_call.1} parent=0
    _
  %s10 = ssub.s32 1, %s8
  %s11 = scalar_select 0, %s10, %s8
  $region1: #{tpu_custom_call.1} parent=0
    #allocation3 [shape = 'u8[16384]{0}', space=vmem, size = 0x4000, scoped, tag = 'output window, operand 0']
    #allocation4 [shape = 's32[2]{0}', space=sflag, size = 0x8, scoped, tag = 'scoped memory for tpu_custom_call.1']
    %12 = vsyncpa [#allocation4], 0
    %s13 = scalar_lea.sflag [#allocation4], 1
    %14 = vsyncpa %s13, 0
    loop: start=0, step=1, limit=4
    $region2: #{tpu_custom_call.1} parent=1 // loop_pre_header
      _
    $region3: #{tpu_custom_call.1} parent=1 // loop_header
      %s16 = sphi 0, %s20
      %p17 = scmp.ge.s32.totalorder %s16, 4
      %s26 = sphi 0, %s28
      %s29 = sphi 0, %s26
      %s30 = sphi 0, %s29
      %s46 = sphi 0, %s30
      %s50 = sphi 0, %s50
      %s52 = sphi 0, %s50
      %s53 = sphi 0, %s52
      %s67 = sphi 0, %s53
      %s71 = sphi 0, %s71
      %s73 = sphi 0, %s71
      %s74 = sphi 0, %s73
      %s88 = sphi 0, %s74
      %s92 = sphi 0, %s92
      %s94 = sphi 0, %s92
      %s95 = sphi 0, %s94
      %s109 = sphi 0, %s95
      %s113 = sphi 0, %s113
      %s115 = sphi 0, %s113
      %s116 = sphi 0, %s115
      %s130 = sphi 0, %s116
      %s134 = sphi 0, %s134
      %s136 = sphi 0, %s134
      %s137 = sphi 0, %s136
      %s151 = sphi 0, %s137
      %s155 = sphi 0, %s155
      %s157 = sphi 0, %s155
      %s158 = sphi 0, %s157
      %s172 = sphi 0, %s158
      %s178 = sphi 0, %s180
      %s181 = sphi 0, %s178
      %s182 = sphi 0, %s181
      %s198 = sphi 0, %s182
    $region4: #{tpu_custom_call.1} parent=1 // loop_header_branch
      %19 = sbr.rel (%p17) target = $region8
    $region5: #{tpu_custom_call.1} parent=1 // loop_body
      %s21 = ssub.s32 %s16, 1
      %s22 = ssub.s32 %s16, 2
      %s23 = sadd.s32 %s16, 1
      %s24 = ssub.s32 %s16, %s23
      %p25 = scmp.eq.s32.totalorder %s24, 0
      %s27 = sadd.s32 %s26, 1
      %s28 = scalar_select %p25, %s26, %s27
      %p31 = pneg %p25
      %p32 = scmp.eq.s32.totalorder %s16, 1
      %p33 = por %p31, %p32
      %p34 = scmp.ne.s32.totalorder %s26, %s29
      %p35 = scmp.eq.s32.totalorder %s16, 0
      %p36 = por %p34, %p35
      %p37 = scmp.ne.s32.totalorder %s26, %s29
      %p38 = scmp.eq.s32.totalorder %s21, 1
      %p39 = por %p37, %p38
      %p40 = scmp.ne.s32.totalorder %s29, %s30
      %p41 = scmp.eq.s32.totalorder %s21, 0
      %p42 = por %p40, %p41
      %p43 = scmp.ne.s32.totalorder %s29, %s30
      %p44 = scmp.eq.s32.totalorder %s22, 1
      %p45 = por %p43, %p44
      %p47 = scmp.ne.s32.totalorder %s30, %s46
      %p48 = scmp.eq.s32.totalorder %s22, 0
      %p49 = por %p47, %p48
      %s51 = sadd.s32 %s50, 1
      %p54 = scmp.eq.s32.totalorder %s16, 1
      %p55 = scmp.ne.s32.totalorder %s50, %s52
      %p56 = scmp.eq.s32.totalorder %s16, 0
      %p57 = por %p55, %p56
      %p58 = scmp.ne.s32.totalorder %s50, %s52
      %p59 = scmp.eq.s32.totalorder %s21, 1
      %p60 = por %p58, %p59
      %p61 = scmp.ne.s32.totalorder %s52, %s53
      %p62 = scmp.eq.s32.totalorder %s21, 0
      %p63 = por %p61, %p62
      %p64 = scmp.ne.s32.totalorder %s52, %s53
      %p65 = scmp.eq.s32.totalorder %s22, 1
      %p66 = por %p64, %p65
      %p68 = scmp.ne.s32.totalorder %s53, %s67
      %p69 = scmp.eq.s32.totalorder %s22, 0
      %p70 = por %p68, %p69
      %s72 = sadd.s32 %s71, 1
      %p75 = scmp.eq.s32.totalorder %s16, 1
      %p76 = scmp.ne.s32.totalorder %s71, %s73
      %p77 = scmp.eq.s32.totalorder %s16, 0
      %p78 = por %p76, %p77
      %p79 = scmp.ne.s32.totalorder %s71, %s73
      %p80 = scmp.eq.s32.totalorder %s21, 1
      %p81 = por %p79, %p80
      %p82 = scmp.ne.s32.totalorder %s73, %s74
      %p83 = scmp.eq.s32.totalorder %s21, 0
      %p84 = por %p82, %p83
      %p85 = scmp.ne.s32.totalorder %s73, %s74
      %p86 = scmp.eq.s32.totalorder %s22, 1
      %p87 = por %p85, %p86
      %p89 = scmp.ne.s32.totalorder %s74, %s88
      %p90 = scmp.eq.s32.totalorder %s22, 0
      %p91 = por %p89, %p90
      %s93 = sadd.s32 %s92, 1
      %p96 = scmp.eq.s32.totalorder %s16, 1
      %p97 = scmp.ne.s32.totalorder %s92, %s94
      %p98 = scmp.eq.s32.totalorder %s16, 0
      %p99 = por %p97, %p98
      %p100 = scmp.ne.s32.totalorder %s92, %s94
      %p101 = scmp.eq.s32.totalorder %s21, 1
      %p102 = por %p100, %p101
      %p103 = scmp.ne.s32.totalorder %s94, %s95
      %p104 = scmp.eq.s32.totalorder %s21, 0
      %p105 = por %p103, %p104
      %p106 = scmp.ne.s32.totalorder %s94, %s95
      %p107 = scmp.eq.s32.totalorder %s22, 1
      %p108 = por %p106, %p107
      %p110 = scmp.ne.s32.totalorder %s95, %s109
      %p111 = scmp.eq.s32.totalorder %s22, 0
      %p112 = por %p110, %p111
      %s114 = sadd.s32 %s113, 1
      %p117 = scmp.eq.s32.totalorder %s16, 1
      %p118 = scmp.ne.s32.totalorder %s113, %s115
      %p119 = scmp.eq.s32.totalorder %s16, 0
      %p120 = por %p118, %p119
      %p121 = scmp.ne.s32.totalorder %s113, %s115
      %p122 = scmp.eq.s32.totalorder %s21, 1
      %p123 = por %p121, %p122
      %p124 = scmp.ne.s32.totalorder %s115, %s116
      %p125 = scmp.eq.s32.totalorder %s21, 0
      %p126 = por %p124, %p125
      %p127 = scmp.ne.s32.totalorder %s115, %s116
      %p128 = scmp.eq.s32.totalorder %s22, 1
      %p129 = por %p127, %p128
      %p131 = scmp.ne.s32.totalorder %s116, %s130
      %p132 = scmp.eq.s32.totalorder %s22, 0
      %p133 = por %p131, %p132
      %s135 = sadd.s32 %s134, 1
      %p138 = scmp.eq.s32.totalorder %s16, 1
      %p139 = scmp.ne.s32.totalorder %s134, %s136
      %p140 = scmp.eq.s32.totalorder %s16, 0
      %p141 = por %p139, %p140
      %p142 = scmp.ne.s32.totalorder %s134, %s136
      %p143 = scmp.eq.s32.totalorder %s21, 1
      %p144 = por %p142, %p143
      %p145 = scmp.ne.s32.totalorder %s136, %s137
      %p146 = scmp.eq.s32.totalorder %s21, 0
      %p147 = por %p145, %p146
      %p148 = scmp.ne.s32.totalorder %s136, %s137
      %p149 = scmp.eq.s32.totalorder %s22, 1
      %p150 = por %p148, %p149
      %p152 = scmp.ne.s32.totalorder %s137, %s151
      %p153 = scmp.eq.s32.totalorder %s22, 0
      %p154 = por %p152, %p153
      %s156 = sadd.s32 %s155, 1
      %p159 = scmp.eq.s32.totalorder %s16, 1
      %p160 = scmp.ne.s32.totalorder %s155, %s157
      %p161 = scmp.eq.s32.totalorder %s16, 0
      %p162 = por %p160, %p161
      %p163 = scmp.ne.s32.totalorder %s155, %s157
      %p164 = scmp.eq.s32.totalorder %s21, 1
      %p165 = por %p163, %p164
      %p166 = scmp.ne.s32.totalorder %s157, %s158
      %p167 = scmp.eq.s32.totalorder %s21, 0
      %p168 = por %p166, %p167
      %p169 = scmp.ne.s32.totalorder %s157, %s158
      %p170 = scmp.eq.s32.totalorder %s22, 1
      %p171 = por %p169, %p170
      %p173 = scmp.ne.s32.totalorder %s158, %s172
      %p174 = scmp.eq.s32.totalorder %s22, 0
      %p175 = por %p173, %p174
      %s176 = ssub.s32 %s16, %s23
      %p177 = scmp.eq.s32.totalorder %s176, 0
      %s179 = sadd.s32 %s178, 1
      %s180 = scalar_select %p177, %s178, %s179
      %p183 = pneg %p177
      %p184 = scmp.eq.s32.totalorder %s16, 1
      %p185 = por %p183, %p184
      %p186 = scmp.ne.s32.totalorder %s178, %s181
      %p187 = scmp.eq.s32.totalorder %s16, 0
      %p188 = por %p186, %p187
      %p189 = scmp.ne.s32.totalorder %s178, %s181
      %p190 = scmp.eq.s32.totalorder %s21, 1
      %p191 = por %p189, %p190
      %p192 = scmp.ne.s32.totalorder %s181, %s182
      %p193 = scmp.eq.s32.totalorder %s21, 0
      %p194 = por %p192, %p193
      %p195 = scmp.ne.s32.totalorder %s181, %s182
      %p196 = scmp.eq.s32.totalorder %s22, 1
      %p197 = por %p195, %p196
      %p199 = scmp.ne.s32.totalorder %s182, %s198
      %p200 = scmp.eq.s32.totalorder %s22, 0
      %p201 = por %p199, %p200
      %p202 = scmp.le.s32.totalorder 1, %s16
      %p203 = scmp.lt.s32.totalorder %s16, 3
      %p204 = pnand %p202, %p203
      %p205 = pneg %p204
      // Predicated region
      $region9: #{tpu_custom_call.1} parent=5 // pred_check
        _
      $region10: #{tpu_custom_call.1} parent=5 // pred_check_branch
        %207 = sbr.rel (%p204) target = $region12
      $region11: #{tpu_custom_call.1} parent=5 // pred_region
        %s208 = ssub.s32 %s16, 1
        // Predicated region
        $region13: #{tpu_custom_call.1} parent=11 // pred_check
          %p209 = pneg %p63
        $region14: #{tpu_custom_call.1} parent=11 // pred_check_branch
          %211 = sbr.rel (%p209) target = $region16
        $region15: #{tpu_custom_call.1} parent=11 // pred_region
          _
        $region16: #{tpu_custom_call.1} parent=11 // pred_fallthru
          _
        // Predicated region
        $region17: #{tpu_custom_call.1} parent=11 // pred_check
          %p212 = pneg %p84
        $region18: #{tpu_custom_call.1} parent=11 // pred_check_branch
          %214 = sbr.rel (%p212) target = $region20
        $region19: #{tpu_custom_call.1} parent=11 // pred_region
          _
        $region20: #{tpu_custom_call.1} parent=11 // pred_fallthru
          _
        // Predicated region
        $region21: #{tpu_custom_call.1} parent=11 // pred_check
          %p215 = pneg %p105
        $region22: #{tpu_custom_call.1} parent=11 // pred_check_branch
          %217 = sbr.rel (%p215) target = $region24
        $region23: #{tpu_custom_call.1} parent=11 // pred_region
          _
        $region24: #{tpu_custom_call.1} parent=11 // pred_fallthru
          _
        // Predicated region
        $region25: #{tpu_custom_call.1} parent=11 // pred_check
          %p218 = pneg %p126
        $region26: #{tpu_custom_call.1} parent=11 // pred_check_branch
          %220 = sbr.rel (%p218) target = $region28
        $region27: #{tpu_custom_call.1} parent=11 // pred_region
          _
        $region28: #{tpu_custom_call.1} parent=11 // pred_fallthru
          _
        // Predicated region
        $region29: #{tpu_custom_call.1} parent=11 // pred_check
          %p221 = pneg %p147
        $region30: #{tpu_custom_call.1} parent=11 // pred_check_branch
          %223 = sbr.rel (%p221) target = $region32
        $region31: #{tpu_custom_call.1} parent=11 // pred_region
          _
        $region32: #{tpu_custom_call.1} parent=11 // pred_fallthru
          _
        // Predicated region
        $region33: #{tpu_custom_call.1} parent=11 // pred_check
          %p224 = pneg %p168
        $region34: #{tpu_custom_call.1} parent=11 // pred_check_branch
          %226 = sbr.rel (%p224) target = $region36
        $region35: #{tpu_custom_call.1} parent=11 // pred_region
          _
        $region36: #{tpu_custom_call.1} parent=11 // pred_fallthru
          _
      $region12: #{tpu_custom_call.1} parent=5 // pred_fallthru
        _
      %p227 = scmp.lt.s32.totalorder %s16, 2
      // Predicated region
      $region37: #{tpu_custom_call.1} parent=5 // pred_check
        %p228 = pneg %p227
      $region38: #{tpu_custom_call.1} parent=5 // pred_check_branch
        %230 = sbr.rel (%p228) target = $region40
      $region39: #{tpu_custom_call.1} parent=5 // pred_region
        // Predicated region
        $region41: #{tpu_custom_call.1} parent=39 // pred_check
          %p231 = pneg %p36
        $region42: #{tpu_custom_call.1} parent=39 // pred_check_branch
          %233 = sbr.rel (%p231) target = $region44
        $region43: #{tpu_custom_call.1} parent=39 // pred_region
          %p234 = scmp.lt.s32.totalorder %s16, 1
          %s235 = scalar_select %p234, %s16, 1
          %s236 = smul.addr %s235, 32
          %s237 = smul.addr %s236, 4
          %s238 = scalar_lea.vmem %s0, %s237
        $region44: #{tpu_custom_call.1} parent=39 // pred_fallthru
          _
      $region40: #{tpu_custom_call.1} parent=5 // pred_fallthru
        _
      %p239 = scmp.le.s32.totalorder 1, %s16
      %p240 = scmp.lt.s32.totalorder %s16, 3
      %p241 = pnand %p239, %p240
      %p242 = pneg %p241
      // Predicated region
      $region45: #{tpu_custom_call.1} parent=5 // pred_check
        _
      $region46: #{tpu_custom_call.1} parent=5 // pred_check_branch
        %244 = sbr.rel (%p241) target = $region48
      $region47: #{tpu_custom_call.1} parent=5 // pred_region
        %s245 = ssub.s32 %s16, 1
        %p246 = scmp.lt.s32.totalorder %s21, 1
        %s247 = scalar_select %p246, %s21, 1
        %s248 = smul.addr %s247, 32
        %s249 = smul.addr %s248, 4
        %s250 = scalar_lea.vmem %s0, %s249
        %p251 = pneg %p42
        %p252 = pneg %p39
        %p253 = pneg %p63
        %p254 = pneg %p60
        %p255 = pneg %p84
        %p256 = pneg %p81
        %p257 = pneg %p105
        %p258 = pneg %p102
        %p259 = pneg %p126
        %p260 = pneg %p123
        %p261 = pneg %p147
        %p262 = pneg %p144
        %p263 = pneg %p168
        %p264 = pneg %p165
        %p265 = pneg %p194
        %p266 = pneg %p191
        %s267 = sand.u32 %s181, 1
        %s268 = scalar_lea.sflag [#allocation4], %s267
        %s269 = sand.u32 %s181, 1
        %s270 = smul.addr %s269, 16
        %s271 = scalar_lea.vmem [#allocation3], %s270
        %p272 = scmp.lt.s32.totalorder %s21, 1
        %s273 = scalar_select %p272, %s21, 1
        %s274 = smul.addr %s273, 32
        %s275 = smul.addr %s274, 4
        %s276 = scalar_lea.vmem %s0, %s275
        %v278 = vld [vmem:[%s276] sm:$0xf]
        %v279 = vld [vmem:[%s276 + $0x4] sm:$0xf]
        %v280 = vld [vmem:[%s276 + $0x8] sm:$0xf]
        %v281 = vld [vmem:[%s276 + $0xc] sm:$0xf]
        %v282 = vld [vmem:[%s276 + $0x10] sm:$0xf]
        %v283 = vld [vmem:[%s276 + $0x14] sm:$0xf]
        %v284 = vld [vmem:[%s276 + $0x18] sm:$0xf]
        %v285 = vld [vmem:[%s276 + $0x1c] sm:$0xf]
        %v286 = vld [vmem:[%s276 + $0x20] sm:$0xf]
        %v287 = vld [vmem:[%s276 + $0x24] sm:$0xf]
        %v288 = vld [vmem:[%s276 + $0x28] sm:$0xf]
        %v289 = vld [vmem:[%s276 + $0x2c] sm:$0xf]
        %v290 = vld [vmem:[%s276 + $0x30] sm:$0xf]
        %v291 = vld [vmem:[%s276 + $0x34] sm:$0xf]
        %v292 = vld [vmem:[%s276 + $0x38] sm:$0xf]
        %v293 = vld [vmem:[%s276 + $0x3c] sm:$0xf]
        %v294 = vld [vmem:[%s276 + $0x40] sm:$0xf]
        %v295 = vld [vmem:[%s276 + $0x44] sm:$0xf]
        %v296 = vld [vmem:[%s276 + $0x48] sm:$0xf]
        %v297 = vld [vmem:[%s276 + $0x4c] sm:$0xf]
        %v298 = vld [vmem:[%s276 + $0x50] sm:$0xf]
        %v299 = vld [vmem:[%s276 + $0x54] sm:$0xf]
        %v300 = vld [vmem:[%s276 + $0x58] sm:$0xf]
        %v301 = vld [vmem:[%s276 + $0x5c] sm:$0xf]
        %v302 = vld [vmem:[%s276 + $0x60] sm:$0xf]
        %v303 = vld [vmem:[%s276 + $0x64] sm:$0xf]
        %v304 = vld [vmem:[%s276 + $0x68] sm:$0xf]
        %v305 = vld [vmem:[%s276 + $0x6c] sm:$0xf]
        %v306 = vld [vmem:[%s276 + $0x70] sm:$0xf]
        %v307 = vld [vmem:[%s276 + $0x74] sm:$0xf]
        %v308 = vld [vmem:[%s276 + $0x78] sm:$0xf]
        %v309 = vld [vmem:[%s276 + $0x7c] sm:$0xf]
        %v310 = vld [vmem:[%s1] sm:$0x3]
        %v311 = vld [vmem:[%s2] sm:$0x1]
        %v313 = vperm.slane %v311, 0
        %v347 = vunpack.c.l.b16 %v278
        %v348 = vunpack.c.l.b16 %v279
        %v349 = vunpack.c.l.b16 %v280
        %v350 = vunpack.c.l.b16 %v281
        %v351 = vunpack.c.l.b16 %v282
        %v352 = vunpack.c.l.b16 %v283
        %v353 = vunpack.c.l.b16 %v284
        %v354 = vunpack.c.l.b16 %v285
        %v355 = vunpack.c.l.b16 %v286
        %v356 = vunpack.c.l.b16 %v287
        %v357 = vunpack.c.l.b16 %v288
        %v358 = vunpack.c.l.b16 %v289
        %v359 = vunpack.c.l.b16 %v290
        %v360 = vunpack.c.l.b16 %v291
        %v361 = vunpack.c.l.b16 %v292
        %v362 = vunpack.c.l.b16 %v293
        %v363 = vunpack.c.l.b16 %v294
        %v364 = vunpack.c.l.b16 %v295
        %v365 = vunpack.c.l.b16 %v296
        %v366 = vunpack.c.l.b16 %v297
        %v367 = vunpack.c.l.b16 %v298
        %v368 = vunpack.c.l.b16 %v299
        %v369 = vunpack.c.l.b16 %v300
        %v370 = vunpack.c.l.b16 %v301
        %v371 = vunpack.c.l.b16 %v302
        %v372 = vunpack.c.l.b16 %v303
        %v373 = vunpack.c.l.b16 %v304
        %v374 = vunpack.c.l.b16 %v305
        %v375 = vunpack.c.l.b16 %v306
        %v376 = vunpack.c.l.b16 %v307
        %v377 = vunpack.c.l.b16 %v308
        %v378 = vunpack.c.l.b16 %v309
        %v379 = vpack.c.b16 %v348, %v347
        %v380 = vpack.c.b16 %v350, %v349
        %v381 = vpack.c.b16 %v352, %v351
        %v382 = vpack.c.b16 %v354, %v353
        %v383 = vpack.c.b16 %v356, %v355
        %v384 = vpack.c.b16 %v358, %v357
        %v385 = vpack.c.b16 %v360, %v359
        %v386 = vpack.c.b16 %v362, %v361
        %v387 = vpack.c.b16 %v364, %v363
        %v388 = vpack.c.b16 %v366, %v365
        %v389 = vpack.c.b16 %v368, %v367
        %v390 = vpack.c.b16 %v370, %v369
        %v391 = vpack.c.b16 %v372, %v371
        %v392 = vpack.c.b16 %v374, %v373
        %v393 = vpack.c.b16 %v376, %v375
        %v394 = vpack.c.b16 %v378, %v377
        %395 = vrot.lane.b32.xlu0 %v379, 124
        %v396 = vpop.permute.xlu0 %395
        %397 = vrot.lane.b32.xlu0 %v380, 124
        %v398 = vpop.permute.xlu0 %397
        %399 = vrot.lane.b32.xlu0 %v381, 124
        %v400 = vpop.permute.xlu0 %399
        %401 = vrot.lane.b32.xlu0 %v382, 124
        %v402 = vpop.permute.xlu0 %401
        %403 = vrot.lane.b32.xlu0 %v383, 124
        %v404 = vpop.permute.xlu0 %403
        %405 = vrot.lane.b32.xlu0 %v384, 124
        %v406 = vpop.permute.xlu0 %405
        %407 = vrot.lane.b32.xlu0 %v385, 124
        %v408 = vpop.permute.xlu0 %407
        %409 = vrot.lane.b32.xlu0 %v386, 124
        %v410 = vpop.permute.xlu0 %409
        %411 = vrot.lane.b32.xlu0 %v387, 124
        %v412 = vpop.permute.xlu0 %411
        %413 = vrot.lane.b32.xlu0 %v388, 124
        %v414 = vpop.permute.xlu0 %413
        %415 = vrot.lane.b32.xlu0 %v389, 124
        %v416 = vpop.permute.xlu0 %415
        %417 = vrot.lane.b32.xlu0 %v390, 124
        %v418 = vpop.permute.xlu0 %417
        %419 = vrot.lane.b32.xlu0 %v391, 124
        %v420 = vpop.permute.xlu0 %419
        %421 = vrot.lane.b32.xlu0 %v392, 124
        %v422 = vpop.permute.xlu0 %421
        %423 = vrot.lane.b32.xlu0 %v393, 124
        %v424 = vpop.permute.xlu0 %423
        %425 = vrot.lane.b32.xlu0 %v394, 124
        %v426 = vpop.permute.xlu0 %425
        %vm427 = vcmask 31744
        %v429 = vsel %vm427, %v396, 0
        %v432 = vsel %vm427, %v398, 0
        %v435 = vsel %vm427, %v400, 0
        %v438 = vsel %vm427, %v402, 0
        %v441 = vsel %vm427, %v404, 0
        %v444 = vsel %vm427, %v406, 0
        %v447 = vsel %vm427, %v408, 0
        %v450 = vsel %vm427, %v410, 0
        %v453 = vsel %vm427, %v412, 0
        %v456 = vsel %vm427, %v414, 0
        %v459 = vsel %vm427, %v416, 0
        %v462 = vsel %vm427, %v418, 0
        %v465 = vsel %vm427, %v420, 0
        %v468 = vsel %vm427, %v422, 0
        %v471 = vsel %vm427, %v424, 0
        %v474 = vsel %vm427, %v426, 0
        %vm476 = vcmask 1041408
        %v478 = vsel %vm476, %v310, 0
        %480 = vmatpush.bf16.msra.mxu0 0
        %481 = vmatpush.bf16.msra.mxu0 0
        %482 = vmatpush.bf16.msra.mxu0 0
        %483 = vmatpush.bf16.msra.mxu0 0
        %484 = vmatpush.bf16.msra.mxu0 0
        %485 = vmatpush.bf16.msra.mxu0 0
        %486 = vmatpush.bf16.msra.mxu0 0
        %487 = vmatpush.bf16.msra.mxu0 %v478
        %488 = vmatmul.bf16.gmra.mxu0 %v429
        %v489 = vpop.f32.mrf.mxu0
        %v490 = vadd.f32 %v313, %v489
        %v491 = vpop.f32.mrf.mxu0
        %v492 = vadd.f32 %v313, %v491
        %493 = vmatmul.bf16.gmra.mxu0 %v432
        %v494 = vpop.f32.mrf.mxu0
        %v495 = vadd.f32 %v313, %v494
        %v496 = vpop.f32.mrf.mxu0
        %v497 = vadd.f32 %v313, %v496
        %498 = vmatmul.bf16.gmra.mxu0 %v435
        %v499 = vpop.f32.mrf.mxu0
        %v500 = vadd.f32 %v313, %v499
        %v501 = vpop.f32.mrf.mxu0
        %v502 = vadd.f32 %v313, %v501
        %503 = vmatmul.bf16.gmra.mxu0 %v438
        %v504 = vpop.f32.mrf.mxu0
        %v505 = vadd.f32 %v313, %v504
        %v506 = vpop.f32.mrf.mxu0
        %v507 = vadd.f32 %v313, %v506
        %508 = vmatmul.bf16.gmra.mxu0 %v441
        %v509 = vpop.f32.mrf.mxu0
        %v510 = vadd.f32 %v313, %v509
        %v511 = vpop.f32.mrf.mxu0
        %v512 = vadd.f32 %v313, %v511
        %513 = vmatmul.bf16.gmra.mxu0 %v444
        %v514 = vpop.f32.mrf.mxu0
        %v515 = vadd.f32 %v313, %v514
        %v516 = vpop.f32.mrf.mxu0
        %v517 = vadd.f32 %v313, %v516
        %518 = vmatmul.bf16.gmra.mxu0 %v447
        %v519 = vpop.f32.mrf.mxu0
        %v520 = vadd.f32 %v313, %v519
        %v521 = vpop.f32.mrf.mxu0
        %v522 = vadd.f32 %v313, %v521
        %523 = vmatmul.bf16.gmra.mxu0 %v450
        %v524 = vpop.f32.mrf.mxu0
        %v525 = vadd.f32 %v313, %v524
        %v526 = vpop.f32.mrf.mxu0
        %v527 = vadd.f32 %v313, %v526
        %528 = vmatmul.bf16.gmra.mxu0 %v453
        %v529 = vpop.f32.mrf.mxu0
        %v530 = vadd.f32 %v313, %v529
        %v531 = vpop.f32.mrf.mxu0
        %v532 = vadd.f32 %v313, %v531
        %533 = vmatmul.bf16.gmra.mxu0 %v456
        %v534 = vpop.f32.mrf.mxu0
        %v535 = vadd.f32 %v313, %v534
        %v536 = vpop.f32.mrf.mxu0
        %v537 = vadd.f32 %v313, %v536
        %538 = vmatmul.bf16.gmra.mxu0 %v459
        %v539 = vpop.f32.mrf.mxu0
        %v540 = vadd.f32 %v313, %v539
        %v541 = vpop.f32.mrf.mxu0
        %v542 = vadd.f32 %v313, %v541
        %543 = vmatmul.bf16.gmra.mxu0 %v462
        %v544 = vpop.f32.mrf.mxu0
        %v545 = vadd.f32 %v313, %v544
        %v546 = vpop.f32.mrf.mxu0
        %v547 = vadd.f32 %v313, %v546
        %548 = vmatmul.bf16.gmra.mxu0 %v465
        %v549 = vpop.f32.mrf.mxu0
        %v550 = vadd.f32 %v313, %v549
        %v551 = vpop.f32.mrf.mxu0
        %v552 = vadd.f32 %v313, %v551
        %553 = vmatmul.bf16.gmra.mxu0 %v468
        %v554 = vpop.f32.mrf.mxu0
        %v555 = vadd.f32 %v313, %v554
        %v556 = vpop.f32.mrf.mxu0
        %v557 = vadd.f32 %v313, %v556
        %558 = vmatmul.bf16.gmra.mxu0 %v471
        %v559 = vpop.f32.mrf.mxu0
        %v560 = vadd.f32 %v313, %v559
        %v561 = vpop.f32.mrf.mxu0
        %v562 = vadd.f32 %v313, %v561
        %563 = vmatmul.bf16.gmra.mxu0 %v474
        %v564 = vpop.f32.mrf.mxu0
        %v565 = vadd.f32 %v313, %v564
        %v566 = vpop.f32.mrf.mxu0
        %v567 = vadd.f32 %v313, %v566
        %568 = vdwg.mxu0
        %v569 = vmax.f32 %v490, 0.0
        %v570 = vmax.f32 %v492, 0.0
        %v571 = vmax.f32 %v495, 0.0
        %v572 = vmax.f32 %v497, 0.0
        %v573 = vmax.f32 %v500, 0.0
        %v574 = vmax.f32 %v502, 0.0
        %v575 = vmax.f32 %v505, 0.0
        %v576 = vmax.f32 %v507, 0.0
        %v577 = vmax.f32 %v510, 0.0
        %v578 = vmax.f32 %v512, 0.0
        %v579 = vmax.f32 %v515, 0.0
        %v580 = vmax.f32 %v517, 0.0
        %v581 = vmax.f32 %v520, 0.0
        %v582 = vmax.f32 %v522, 0.0
        %v583 = vmax.f32 %v525, 0.0
        %v584 = vmax.f32 %v527, 0.0
        %v585 = vmax.f32 %v530, 0.0
        %v586 = vmax.f32 %v532, 0.0
        %v587 = vmax.f32 %v535, 0.0
        %v588 = vmax.f32 %v537, 0.0
        %v589 = vmax.f32 %v540, 0.0
        %v590 = vmax.f32 %v542, 0.0
        %v591 = vmax.f32 %v545, 0.0
        %v592 = vmax.f32 %v547, 0.0
        %v593 = vmax.f32 %v550, 0.0
        %v594 = vmax.f32 %v552, 0.0
        %v595 = vmax.f32 %v555, 0.0
        %v596 = vmax.f32 %v557, 0.0
        %v597 = vmax.f32 %v560, 0.0
        %v598 = vmax.f32 %v562, 0.0
        %v599 = vmax.f32 %v565, 0.0
        %v600 = vmax.f32 %v567, 0.0
        %601 = vst.msk [vmem:[#allocation2 + $0x7] sm:$0xff] %vm427, 0.0
        %602 = vst.msk [vmem:[#allocation2 + $0xf] sm:$0xff] %vm427, 0.0
        %vm603 = vcmask 25600
        %604 = vst.msk [vmem:[#allocation2 + $0x17] sm:$0x3] %vm603, 0.0
        %s605 = scalar_lea.vmem [#allocation2], 544
        %606 = vst.msk [vmem:[%s605 + $0x7] sm:$0xff] %vm427, 0.0
        %607 = vst.msk [vmem:[%s605 + $0xf] sm:$0xff] %vm427, 0.0
        %608 = vst.msk [vmem:[%s605 + $0x17] sm:$0x3] %vm603, 0.0
        %s609 = scalar_lea.vmem [#allocation2], 32
        %vm610 = vcmask 24576
        %611 = vst.msk [vmem:[%s609 + $0x7] sm:$0x1] %vm610, 0.0
        %612 = vst.msk [vmem:[%s609 + $0x27] sm:$0x1] %vm610, 0.0
        %613 = vst.msk [vmem:[%s609 + $0x47] sm:$0x1] %vm610, 0.0
        %614 = vst.msk [vmem:[%s609 + $0x67] sm:$0x1] %vm610, 0.0
        %615 = vst.msk [vmem:[%s609 + $0x87] sm:$0x1] %vm610, 0.0
        %616 = vst.msk [vmem:[%s609 + $0xa7] sm:$0x1] %vm610, 0.0
        %617 = vst.msk [vmem:[%s609 + $0xc7] sm:$0x1] %vm610, 0.0
        %618 = vst.msk [vmem:[%s609 + $0xe7] sm:$0x1] %vm610, 0.0
        %619 = vst.msk [vmem:[%s609 + $0x107] sm:$0x1] %vm610, 0.0
        %620 = vst.msk [vmem:[%s609 + $0x127] sm:$0x1] %vm610, 0.0
        %621 = vst.msk [vmem:[%s609 + $0x147] sm:$0x1] %vm610, 0.0
        %622 = vst.msk [vmem:[%s609 + $0x167] sm:$0x1] %vm610, 0.0
        %623 = vst.msk [vmem:[%s609 + $0x187] sm:$0x1] %vm610, 0.0
        %624 = vst.msk [vmem:[%s609 + $0x1a7] sm:$0x1] %vm610, 0.0
        %625 = vst.msk [vmem:[%s609 + $0x1c7] sm:$0x1] %vm610, 0.0
        %626 = vst.msk [vmem:[%s609 + $0x1e7] sm:$0x1] %vm610, 0.0
        %627 = vst.msk [vmem:[%s609 + $0x18] sm:$0x1] %vm610, 0.0
        %628 = vst.msk [vmem:[%s609 + $0x38] sm:$0x1] %vm610, 0.0
        %629 = vst.msk [vmem:[%s609 + $0x58] sm:$0x1] %vm610, 0.0
        %630 = vst.msk [vmem:[%s609 + $0x78] sm:$0x1] %vm610, 0.0
        %631 = vst.msk [vmem:[%s609 + $0x98] sm:$0x1] %vm610, 0.0
        %632 = vst.msk [vmem:[%s609 + $0xb8] sm:$0x1] %vm610, 0.0
        %633 = vst.msk [vmem:[%s609 + $0xd8] sm:$0x1] %vm610, 0.0
        %634 = vst.msk [vmem:[%s609 + $0xf8] sm:$0x1] %vm610, 0.0
        %635 = vst.msk [vmem:[%s609 + $0x118] sm:$0x1] %vm610, 0.0
        %636 = vst.msk [vmem:[%s609 + $0x138] sm:$0x1] %vm610, 0.0
        %637 = vst.msk [vmem:[%s609 + $0x158] sm:$0x1] %vm610, 0.0
        %638 = vst.msk [vmem:[%s609 + $0x178] sm:$0x1] %vm610, 0.0
        %639 = vst.msk [vmem:[%s609 + $0x198] sm:$0x1] %vm610, 0.0
        %640 = vst.msk [vmem:[%s609 + $0x1b8] sm:$0x1] %vm610, 0.0
        %641 = vst.msk [vmem:[%s609 + $0x1d8] sm:$0x1] %vm610, 0.0
        %642 = vst.msk [vmem:[%s609 + $0x1f8] sm:$0x1] %vm610, 0.0
        %643 = vst.msk [vmem:[%s609 + $0x8] sm:$0xff] %vm427, %v569
        %644 = vst.msk [vmem:[%s609 + $0x10] sm:$0xff] %vm427, %v570
        %645 = vst.msk [vmem:[%s609 + $0x28] sm:$0xff] %vm427, %v571
        %646 = vst.msk [vmem:[%s609 + $0x30] sm:$0xff] %vm427, %v572
        %647 = vst.msk [vmem:[%s609 + $0x48] sm:$0xff] %vm427, %v573
        %648 = vst.msk [vmem:[%s609 + $0x50] sm:$0xff] %vm427, %v574
        %649 = vst.msk [vmem:[%s609 + $0x68] sm:$0xff] %vm427, %v575
        %650 = vst.msk [vmem:[%s609 + $0x70] sm:$0xff] %vm427, %v576
        %651 = vst.msk [vmem:[%s609 + $0x88] sm:$0xff] %vm427, %v577
        %652 = vst.msk [vmem:[%s609 + $0x90] sm:$0xff] %vm427, %v578
        %653 = vst.msk [vmem:[%s609 + $0xa8] sm:$0xff] %vm427, %v579
        %654 = vst.msk [vmem:[%s609 + $0xb0] sm:$0xff] %vm427, %v580
        %655 = vst.msk [vmem:[%s609 + $0xc8] sm:$0xff] %vm427, %v581
        %656 = vst.msk [vmem:[%s609 + $0xd0] sm:$0xff] %vm427, %v582
        %657 = vst.msk [vmem:[%s609 + $0xe8] sm:$0xff] %vm427, %v583
        %658 = vst.msk [vmem:[%s609 + $0xf0] sm:$0xff] %vm427, %v584
        %659 = vst.msk [vmem:[%s609 + $0x108] sm:$0xff] %vm427, %v585
        %660 = vst.msk [vmem:[%s609 + $0x110] sm:$0xff] %vm427, %v586
        %661 = vst.msk [vmem:[%s609 + $0x128] sm:$0xff] %vm427, %v587
        %662 = vst.msk [vmem:[%s609 + $0x130] sm:$0xff] %vm427, %v588
        %663 = vst.msk [vmem:[%s609 + $0x148] sm:$0xff] %vm427, %v589
        %664 = vst.msk [vmem:[%s609 + $0x150] sm:$0xff] %vm427, %v590
        %665 = vst.msk [vmem:[%s609 + $0x168] sm:$0xff] %vm427, %v591
        %666 = vst.msk [vmem:[%s609 + $0x170] sm:$0xff] %vm427, %v592
        %667 = vst.msk [vmem:[%s609 + $0x188] sm:$0xff] %vm427, %v593
        %668 = vst.msk [vmem:[%s609 + $0x190] sm:$0xff] %vm427, %v594
        %669 = vst.msk [vmem:[%s609 + $0x1a8] sm:$0xff] %vm427, %v595
        %670 = vst.msk [vmem:[%s609 + $0x1b0] sm:$0xff] %vm427, %v596
        %671 = vst.msk [vmem:[%s609 + $0x1c8] sm:$0xff] %vm427, %v597
        %672 = vst.msk [vmem:[%s609 + $0x1d0] sm:$0xff] %vm427, %v598
        %673 = vst.msk [vmem:[%s609 + $0x1e8] sm:$0xff] %vm427, %v599
        %674 = vst.msk [vmem:[%s609 + $0x1f0] sm:$0xff] %vm427, %v600
        %v675 = vld [vmem:[%s3] sm:$0xff]
        %v676 = vld [vmem:[%s3 + $0x8] sm:$0x1]
        %v677 = vld [vmem:[#allocation2 + $0x7] sm:$0xff]
        %v678 = vld [vmem:[#allocation2 + $0xf] sm:$0xff]
        %v679 = vld [vmem:[#allocation2 + $0x27] sm:$0xff]
        %v680 = vld [vmem:[#allocation2 + $0x2f] sm:$0xff]
        %v681 = vld [vmem:[#allocation2 + $0x47] sm:$0xff]
        %v682 = vld [vmem:[#allocation2 + $0x4f] sm:$0xff]
        %v683 = vld [vmem:[#allocation2 + $0x67] sm:$0xff]
        %v684 = vld [vmem:[#allocation2 + $0x6f] sm:$0xff]
        %v685 = vld [vmem:[#allocation2 + $0x87] sm:$0xff]
        %v686 = vld [vmem:[#allocation2 + $0x8f] sm:$0xff]
        %v687 = vld [vmem:[#allocation2 + $0xa7] sm:$0xff]
        %v688 = vld [vmem:[#allocation2 + $0xaf] sm:$0xff]
        %v689 = vld [vmem:[#allocation2 + $0xc7] sm:$0xff]
        %v690 = vld [vmem:[#allocation2 + $0xcf] sm:$0xff]
        %v691 = vld [vmem:[#allocation2 + $0xe7] sm:$0xff]
        %v692 = vld [vmem:[#allocation2 + $0xef] sm:$0xff]
        %v693 = vld [vmem:[#allocation2 + $0x107] sm:$0xff]
        %v694 = vld [vmem:[#allocation2 + $0x10f] sm:$0xff]
        %v695 = vld [vmem:[#allocation2 + $0x127] sm:$0xff]
        %v696 = vld [vmem:[#allocation2 + $0x12f] sm:$0xff]
        %v697 = vld [vmem:[#allocation2 + $0x147] sm:$0xff]
        %v698 = vld [vmem:[#allocation2 + $0x14f] sm:$0xff]
        %v699 = vld [vmem:[#allocation2 + $0x167] sm:$0xff]
        %v700 = vld [vmem:[#allocation2 + $0x16f] sm:$0xff]
        %v701 = vld [vmem:[#allocation2 + $0x187] sm:$0xff]
        %v702 = vld [vmem:[#allocation2 + $0x18f] sm:$0xff]
        %v703 = vld [vmem:[#allocation2 + $0x1a7] sm:$0xff]
        %v704 = vld [vmem:[#allocation2 + $0x1af] sm:$0xff]
        %v705 = vld [vmem:[#allocation2 + $0x1c7] sm:$0xff]
        %v706 = vld [vmem:[#allocation2 + $0x1cf] sm:$0xff]
        %v707 = vld [vmem:[#allocation2 + $0x1e7] sm:$0xff]
        %v708 = vld [vmem:[#allocation2 + $0x1ef] sm:$0xff]
        %v709 = vperm.slane %v675, 0
        %v710 = vmul.f32 %v677, %v709
        %v711 = vmul.f32 %v678, %v709
        %v712 = vmul.f32 %v679, %v709
        %v713 = vmul.f32 %v680, %v709
        %v714 = vmul.f32 %v681, %v709
        %v715 = vmul.f32 %v682, %v709
        %v716 = vmul.f32 %v683, %v709
        %v717 = vmul.f32 %v684, %v709
        %v718 = vmul.f32 %v685, %v709
        %v719 = vmul.f32 %v686, %v709
        %v720 = vmul.f32 %v687, %v709
        %v721 = vmul.f32 %v688, %v709
        %v722 = vmul.f32 %v689, %v709
        %v723 = vmul.f32 %v690, %v709
        %v724 = vmul.f32 %v691, %v709
        %v725 = vmul.f32 %v692, %v709
        %v726 = vmul.f32 %v693, %v709
        %v727 = vmul.f32 %v694, %v709
        %v728 = vmul.f32 %v695, %v709
        %v729 = vmul.f32 %v696, %v709
        %v730 = vmul.f32 %v697, %v709
        %v731 = vmul.f32 %v698, %v709
        %v732 = vmul.f32 %v699, %v709
        %v733 = vmul.f32 %v700, %v709
        %v734 = vmul.f32 %v701, %v709
        %v735 = vmul.f32 %v702, %v709
        %v736 = vmul.f32 %v703, %v709
        %v737 = vmul.f32 %v704, %v709
        %v738 = vmul.f32 %v705, %v709
        %v739 = vmul.f32 %v706, %v709
        %v740 = vmul.f32 %v707, %v709
        %v741 = vmul.f32 %v708, %v709
        %v742 = vld [vmem:[#allocation2 + $0x8] sm:$0xff]
        %v743 = vld [vmem:[#allocation2 + $0x10] sm:$0xff]
        %v744 = vld [vmem:[#allocation2 + $0x28] sm:$0xff]
        %v745 = vld [vmem:[#allocation2 + $0x30] sm:$0xff]
        %v746 = vld [vmem:[#allocation2 + $0x48] sm:$0xff]
        %v747 = vld [vmem:[#allocation2 + $0x50] sm:$0xff]
        %v748 = vld [vmem:[#allocation2 + $0x68] sm:$0xff]
        %v749 = vld [vmem:[#allocation2 + $0x70] sm:$0xff]
        %v750 = vld [vmem:[#allocation2 + $0x88] sm:$0xff]
        %v751 = vld [vmem:[#allocation2 + $0x90] sm:$0xff]
        %v752 = vld [vmem:[#allocation2 + $0xa8] sm:$0xff]
        %v753 = vld [vmem:[#allocation2 + $0xb0] sm:$0xff]
        %v754 = vld [vmem:[#allocation2 + $0xc8] sm:$0xff]
        %v755 = vld [vmem:[#allocation2 + $0xd0] sm:$0xff]
        %v756 = vld [vmem:[#allocation2 + $0xe8] sm:$0xff]
        %v757 = vld [vmem:[#allocation2 + $0xf0] sm:$0xff]
        %v758 = vld [vmem:[#allocation2 + $0x108] sm:$0xff]
        %v759 = vld [vmem:[#allocation2 + $0x110] sm:$0xff]
        %v760 = vld [vmem:[#allocation2 + $0x128] sm:$0xff]
        %v761 = vld [vmem:[#allocation2 + $0x130] sm:$0xff]
        %v762 = vld [vmem:[#allocation2 + $0x148] sm:$0xff]
        %v763 = vld [vmem:[#allocation2 + $0x150] sm:$0xff]
        %v764 = vld [vmem:[#allocation2 + $0x168] sm:$0xff]
        %v765 = vld [vmem:[#allocation2 + $0x170] sm:$0xff]
        %v766 = vld [vmem:[#allocation2 + $0x188] sm:$0xff]
        %v767 = vld [vmem:[#allocation2 + $0x190] sm:$0xff]
        %v768 = vld [vmem:[#allocation2 + $0x1a8] sm:$0xff]
        %v769 = vld [vmem:[#allocation2 + $0x1b0] sm:$0xff]
        %v770 = vld [vmem:[#allocation2 + $0x1c8] sm:$0xff]
        %v771 = vld [vmem:[#allocation2 + $0x1d0] sm:$0xff]
        %v772 = vld [vmem:[#allocation2 + $0x1e8] sm:$0xff]
        %v773 = vld [vmem:[#allocation2 + $0x1f0] sm:$0xff]
        %v774 = vperm.slane %v675, 1
        %v775 = vmul.f32 %v742, %v774
        %v776 = vmul.f32 %v743, %v774
        %v777 = vmul.f32 %v744, %v774
        %v778 = vmul.f32 %v745, %v774
        %v779 = vmul.f32 %v746, %v774
        %v780 = vmul.f32 %v747, %v774
        %v781 = vmul.f32 %v748, %v774
        %v782 = vmul.f32 %v749, %v774
        %v783 = vmul.f32 %v750, %v774
        %v784 = vmul.f32 %v751, %v774
        %v785 = vmul.f32 %v752, %v774
        %v786 = vmul.f32 %v753, %v774
        %v787 = vmul.f32 %v754, %v774
        %v788 = vmul.f32 %v755, %v774
        %v789 = vmul.f32 %v756, %v774
        %v790 = vmul.f32 %v757, %v774
        %v791 = vmul.f32 %v758, %v774
        %v792 = vmul.f32 %v759, %v774
        %v793 = vmul.f32 %v760, %v774
        %v794 = vmul.f32 %v761, %v774
        %v795 = vmul.f32 %v762, %v774
        %v796 = vmul.f32 %v763, %v774
        %v797 = vmul.f32 %v764, %v774
        %v798 = vmul.f32 %v765, %v774
        %v799 = vmul.f32 %v766, %v774
        %v800 = vmul.f32 %v767, %v774
        %v801 = vmul.f32 %v768, %v774
        %v802 = vmul.f32 %v769, %v774
        %v803 = vmul.f32 %v770, %v774
        %v804 = vmul.f32 %v771, %v774
        %v805 = vmul.f32 %v772, %v774
        %v806 = vmul.f32 %v773, %v774
        %v807 = vadd.f32 %v710, %v775
        %v808 = vadd.f32 %v711, %v776
        %v809 = vadd.f32 %v712, %v777
        %v810 = vadd.f32 %v713, %v778
        %v811 = vadd.f32 %v714, %v779
        %v812 = vadd.f32 %v715, %v780
        %v813 = vadd.f32 %v716, %v781
        %v814 = vadd.f32 %v717, %v782
        %v815 = vadd.f32 %v718, %v783
        %v816 = vadd.f32 %v719, %v784
        %v817 = vadd.f32 %v720, %v785
        %v818 = vadd.f32 %v721, %v786
        %v819 = vadd.f32 %v722, %v787
        %v820 = vadd.f32 %v723, %v788
        %v821 = vadd.f32 %v724, %v789
        %v822 = vadd.f32 %v725, %v790
        %v823 = vadd.f32 %v726, %v791
        %v824 = vadd.f32 %v727, %v792
        %v825 = vadd.f32 %v728, %v793
        %v826 = vadd.f32 %v729, %v794
        %v827 = vadd.f32 %v730, %v795
        %v828 = vadd.f32 %v731, %v796
        %v829 = vadd.f32 %v732, %v797
        %v830 = vadd.f32 %v733, %v798
        %v831 = vadd.f32 %v734, %v799
        %v832 = vadd.f32 %v735, %v800
        %v833 = vadd.f32 %v736, %v801
        %v834 = vadd.f32 %v737, %v802
        %v835 = vadd.f32 %v738, %v803
        %v836 = vadd.f32 %v739, %v804
        %v837 = vadd.f32 %v740, %v805
        %v838 = vadd.f32 %v741, %v806
        %v839 = vld [vmem:[#allocation2 + $0x9] sm:$0xff]
        %v840 = vld [vmem:[#allocation2 + $0x11] sm:$0xff]
        %v841 = vld [vmem:[#allocation2 + $0x29] sm:$0xff]
        %v842 = vld [vmem:[#allocation2 + $0x31] sm:$0xff]
        %v843 = vld [vmem:[#allocation2 + $0x49] sm:$0xff]
        %v844 = vld [vmem:[#allocation2 + $0x51] sm:$0xff]
        %v845 = vld [vmem:[#allocation2 + $0x69] sm:$0xff]
        %v846 = vld [vmem:[#allocation2 + $0x71] sm:$0xff]
        %v847 = vld [vmem:[#allocation2 + $0x89] sm:$0xff]
        %v848 = vld [vmem:[#allocation2 + $0x91] sm:$0xff]
        %v849 = vld [vmem:[#allocation2 + $0xa9] sm:$0xff]
        %v850 = vld [vmem:[#allocation2 + $0xb1] sm:$0xff]
        %v851 = vld [vmem:[#allocation2 + $0xc9] sm:$0xff]
        %v852 = vld [vmem:[#allocation2 + $0xd1] sm:$0xff]
        %v853 = vld [vmem:[#allocation2 + $0xe9] sm:$0xff]
        %v854 = vld [vmem:[#allocation2 + $0xf1] sm:$0xff]
        %v855 = vld [vmem:[#allocation2 + $0x109] sm:$0xff]
        %v856 = vld [vmem:[#allocation2 + $0x111] sm:$0xff]
        %v857 = vld [vmem:[#allocation2 + $0x129] sm:$0xff]
        %v858 = vld [vmem:[#allocation2 + $0x131] sm:$0xff]
        %v859 = vld [vmem:[#allocation2 + $0x149] sm:$0xff]
        %v860 = vld [vmem:[#allocation2 + $0x151] sm:$0xff]
        %v861 = vld [vmem:[#allocation2 + $0x169] sm:$0xff]
        %v862 = vld [vmem:[#allocation2 + $0x171] sm:$0xff]
        %v863 = vld [vmem:[#allocation2 + $0x189] sm:$0xff]
        %v864 = vld [vmem:[#allocation2 + $0x191] sm:$0xff]
        %v865 = vld [vmem:[#allocation2 + $0x1a9] sm:$0xff]
        %v866 = vld [vmem:[#allocation2 + $0x1b1] sm:$0xff]
        %v867 = vld [vmem:[#allocation2 + $0x1c9] sm:$0xff]
        %v868 = vld [vmem:[#allocation2 + $0x1d1] sm:$0xff]
        %v869 = vld [vmem:[#allocation2 + $0x1e9] sm:$0xff]
        %v870 = vld [vmem:[#allocation2 + $0x1f1] sm:$0xff]
        %v871 = vperm.slane %v675, 2
        %v872 = vmul.f32 %v839, %v871
        %v873 = vmul.f32 %v840, %v871
        %v874 = vmul.f32 %v841, %v871
        %v875 = vmul.f32 %v842, %v871
        %v876 = vmul.f32 %v843, %v871
        %v877 = vmul.f32 %v844, %v871
        %v878 = vmul.f32 %v845, %v871
        %v879 = vmul.f32 %v846, %v871
        %v880 = vmul.f32 %v847, %v871
        %v881 = vmul.f32 %v848, %v871
        %v882 = vmul.f32 %v849, %v871
        %v883 = vmul.f32 %v850, %v871
        %v884 = vmul.f32 %v851, %v871
        %v885 = vmul.f32 %v852, %v871
        %v886 = vmul.f32 %v853, %v871
        %v887 = vmul.f32 %v854, %v871
        %v888 = vmul.f32 %v855, %v871
        %v889 = vmul.f32 %v856, %v871
        %v890 = vmul.f32 %v857, %v871
        %v891 = vmul.f32 %v858, %v871
        %v892 = vmul.f32 %v859, %v871
        %v893 = vmul.f32 %v860, %v871
        %v894 = vmul.f32 %v861, %v871
        %v895 = vmul.f32 %v862, %v871
        %v896 = vmul.f32 %v863, %v871
        %v897 = vmul.f32 %v864, %v871
        %v898 = vmul.f32 %v865, %v871
        %v899 = vmul.f32 %v866, %v871
        %v900 = vmul.f32 %v867, %v871
        %v901 = vmul.f32 %v868, %v871
        %v902 = vmul.f32 %v869, %v871
        %v903 = vmul.f32 %v870, %v871
        %v904 = vadd.f32 %v807, %v872
        %v905 = vadd.f32 %v808, %v873
        %v906 = vadd.f32 %v809, %v874
        %v907 = vadd.f32 %v810, %v875
        %v908 = vadd.f32 %v811, %v876
        %v909 = vadd.f32 %v812, %v877
        %v910 = vadd.f32 %v813, %v878
        %v911 = vadd.f32 %v814, %v879
        %v912 = vadd.f32 %v815, %v880
        %v913 = vadd.f32 %v816, %v881
        %v914 = vadd.f32 %v817, %v882
        %v915 = vadd.f32 %v818, %v883
        %v916 = vadd.f32 %v819, %v884
        %v917 = vadd.f32 %v820, %v885
        %v918 = vadd.f32 %v821, %v886
        %v919 = vadd.f32 %v822, %v887
        %v920 = vadd.f32 %v823, %v888
        %v921 = vadd.f32 %v824, %v889
        %v922 = vadd.f32 %v825, %v890
        %v923 = vadd.f32 %v826, %v891
        %v924 = vadd.f32 %v827, %v892
        %v925 = vadd.f32 %v828, %v893
        %v926 = vadd.f32 %v829, %v894
        %v927 = vadd.f32 %v830, %v895
        %v928 = vadd.f32 %v831, %v896
        %v929 = vadd.f32 %v832, %v897
        %v930 = vadd.f32 %v833, %v898
        %v931 = vadd.f32 %v834, %v899
        %v932 = vadd.f32 %v835, %v900
        %v933 = vadd.f32 %v836, %v901
        %v934 = vadd.f32 %v837, %v902
        %v935 = vadd.f32 %v838, %v903
        %v936 = vld [vmem:[%s609 + $0x7] sm:$0xff]
        %v937 = vld [vmem:[%s609 + $0xf] sm:$0xff]
        %v938 = vld [vmem:[%s609 + $0x27] sm:$0xff]
        %v939 = vld [vmem:[%s609 + $0x2f] sm:$0xff]
        %v940 = vld [vmem:[%s609 + $0x47] sm:$0xff]
        %v941 = vld [vmem:[%s609 + $0x4f] sm:$0xff]
        %v942 = vld [vmem:[%s609 + $0x67] sm:$0xff]
        %v943 = vld [vmem:[%s609 + $0x6f] sm:$0xff]
        %v944 = vld [vmem:[%s609 + $0x87] sm:$0xff]
        %v945 = vld [vmem:[%s609 + $0x8f] sm:$0xff]
        %v946 = vld [vmem:[%s609 + $0xa7] sm:$0xff]
        %v947 = vld [vmem:[%s609 + $0xaf] sm:$0xff]
        %v948 = vld [vmem:[%s609 + $0xc7] sm:$0xff]
        %v949 = vld [vmem:[%s609 + $0xcf] sm:$0xff]
        %v950 = vld [vmem:[%s609 + $0xe7] sm:$0xff]
        %v951 = vld [vmem:[%s609 + $0xef] sm:$0xff]
        %v952 = vld [vmem:[%s609 + $0x107] sm:$0xff]
        %v953 = vld [vmem:[%s609 + $0x10f] sm:$0xff]
        %v954 = vld [vmem:[%s609 + $0x127] sm:$0xff]
        %v955 = vld [vmem:[%s609 + $0x12f] sm:$0xff]
        %v956 = vld [vmem:[%s609 + $0x147] sm:$0xff]
        %v957 = vld [vmem:[%s609 + $0x14f] sm:$0xff]
        %v958 = vld [vmem:[%s609 + $0x167] sm:$0xff]
        %v959 = vld [vmem:[%s609 + $0x16f] sm:$0xff]
        %v960 = vld [vmem:[%s609 + $0x187] sm:$0xff]
        %v961 = vld [vmem:[%s609 + $0x18f] sm:$0xff]
        %v962 = vld [vmem:[%s609 + $0x1a7] sm:$0xff]
        %v963 = vld [vmem:[%s609 + $0x1af] sm:$0xff]
        %v964 = vld [vmem:[%s609 + $0x1c7] sm:$0xff]
        %v965 = vld [vmem:[%s609 + $0x1cf] sm:$0xff]
        %v966 = vld [vmem:[%s609 + $0x1e7] sm:$0xff]
        %v967 = vld [vmem:[%s609 + $0x1ef] sm:$0xff]
        %v968 = vperm.slane %v675, 3
        %v969 = vmul.f32 %v936, %v968
        %v970 = vmul.f32 %v937, %v968
        %v971 = vmul.f32 %v938, %v968
        %v972 = vmul.f32 %v939, %v968
        %v973 = vmul.f32 %v940, %v968
        %v974 = vmul.f32 %v941, %v968
        %v975 = vmul.f32 %v942, %v968
        %v976 = vmul.f32 %v943, %v968
        %v977 = vmul.f32 %v944, %v968
        %v978 = vmul.f32 %v945, %v968
        %v979 = vmul.f32 %v946, %v968
        %v980 = vmul.f32 %v947, %v968
        %v981 = vmul.f32 %v948, %v968
        %v982 = vmul.f32 %v949, %v968
        %v983 = vmul.f32 %v950, %v968
        %v984 = vmul.f32 %v951, %v968
        %v985 = vmul.f32 %v952, %v968
        %v986 = vmul.f32 %v953, %v968
        %v987 = vmul.f32 %v954, %v968
        %v988 = vmul.f32 %v955, %v968
        %v989 = vmul.f32 %v956, %v968
        %v990 = vmul.f32 %v957, %v968
        %v991 = vmul.f32 %v958, %v968
        %v992 = vmul.f32 %v959, %v968
        %v993 = vmul.f32 %v960, %v968
        %v994 = vmul.f32 %v961, %v968
        %v995 = vmul.f32 %v962, %v968
        %v996 = vmul.f32 %v963, %v968
        %v997 = vmul.f32 %v964, %v968
        %v998 = vmul.f32 %v965, %v968
        %v999 = vmul.f32 %v966, %v968
        %v1000 = vmul.f32 %v967, %v968
        %v1001 = vadd.f32 %v904, %v969
        %v1002 = vadd.f32 %v905, %v970
        %v1003 = vadd.f32 %v906, %v971
        %v1004 = vadd.f32 %v907, %v972
        %v1005 = vadd.f32 %v908, %v973
        %v1006 = vadd.f32 %v909, %v974
        %v1007 = vadd.f32 %v910, %v975
        %v1008 = vadd.f32 %v911, %v976
        %v1009 = vadd.f32 %v912, %v977
        %v1010 = vadd.f32 %v913, %v978
        %v1011 = vadd.f32 %v914, %v979
        %v1012 = vadd.f32 %v915, %v980
        %v1013 = vadd.f32 %v916, %v981
        %v1014 = vadd.f32 %v917, %v982
        %v1015 = vadd.f32 %v918, %v983
        %v1016 = vadd.f32 %v919, %v984
        %v1017 = vadd.f32 %v920, %v985
        %v1018 = vadd.f32 %v921, %v986
        %v1019 = vadd.f32 %v922, %v987
        %v1020 = vadd.f32 %v923, %v988
        %v1021 = vadd.f32 %v924, %v989
        %v1022 = vadd.f32 %v925, %v990
        %v1023 = vadd.f32 %v926, %v991
        %v1024 = vadd.f32 %v927, %v992
        %v1025 = vadd.f32 %v928, %v993
        %v1026 = vadd.f32 %v929, %v994
        %v1027 = vadd.f32 %v930, %v995
        %v1028 = vadd.f32 %v931, %v996
        %v1029 = vadd.f32 %v932, %v997
        %v1030 = vadd.f32 %v933, %v998
        %v1031 = vadd.f32 %v934, %v999
        %v1032 = vadd.f32 %v935, %v1000
        %v1033 = vld [vmem:[%s609 + $0x8] sm:$0xff]
        %v1034 = vld [vmem:[%s609 + $0x10] sm:$0xff]
        %v1035 = vld [vmem:[%s609 + $0x28] sm:$0xff]
        %v1036 = vld [vmem:[%s609 + $0x30] sm:$0xff]
        %v1037 = vld [vmem:[%s609 + $0x48] sm:$0xff]
        %v1038 = vld [vmem:[%s609 + $0x50] sm:$0xff]
        %v1039 = vld [vmem:[%s609 + $0x68] sm:$0xff]
        %v1040 = vld [vmem:[%s609 + $0x70] sm:$0xff]
        %v1041 = vld [vmem:[%s609 + $0x88] sm:$0xff]
        %v1042 = vld [vmem:[%s609 + $0x90] sm:$0xff]
        %v1043 = vld [vmem:[%s609 + $0xa8] sm:$0xff]
        %v1044 = vld [vmem:[%s609 + $0xb0] sm:$0xff]
        %v1045 = vld [vmem:[%s609 + $0xc8] sm:$0xff]
        %v1046 = vld [vmem:[%s609 + $0xd0] sm:$0xff]
        %v1047 = vld [vmem:[%s609 + $0xe8] sm:$0xff]
        %v1048 = vld [vmem:[%s609 + $0xf0] sm:$0xff]
        %v1049 = vld [vmem:[%s609 + $0x108] sm:$0xff]
        %v1050 = vld [vmem:[%s609 + $0x110] sm:$0xff]
        %v1051 = vld [vmem:[%s609 + $0x128] sm:$0xff]
        %v1052 = vld [vmem:[%s609 + $0x130] sm:$0xff]
        %v1053 = vld [vmem:[%s609 + $0x148] sm:$0xff]
        %v1054 = vld [vmem:[%s609 + $0x150] sm:$0xff]
        %v1055 = vld [vmem:[%s609 + $0x168] sm:$0xff]
        %v1056 = vld [vmem:[%s609 + $0x170] sm:$0xff]
        %v1057 = vld [vmem:[%s609 + $0x188] sm:$0xff]
        %v1058 = vld [vmem:[%s609 + $0x190] sm:$0xff]
        %v1059 = vld [vmem:[%s609 + $0x1a8] sm:$0xff]
        %v1060 = vld [vmem:[%s609 + $0x1b0] sm:$0xff]
        %v1061 = vld [vmem:[%s609 + $0x1c8] sm:$0xff]
        %v1062 = vld [vmem:[%s609 + $0x1d0] sm:$0xff]
        %v1063 = vld [vmem:[%s609 + $0x1e8] sm:$0xff]
        %v1064 = vld [vmem:[%s609 + $0x1f0] sm:$0xff]
        %v1065 = vperm.slane %v675, 4
        %v1066 = vmul.f32 %v1033, %v1065
        %v1067 = vmul.f32 %v1034, %v1065
        %v1068 = vmul.f32 %v1035, %v1065
        %v1069 = vmul.f32 %v1036, %v1065
        %v1070 = vmul.f32 %v1037, %v1065
        %v1071 = vmul.f32 %v1038, %v1065
        %v1072 = vmul.f32 %v1039, %v1065
        %v1073 = vmul.f32 %v1040, %v1065
        %v1074 = vmul.f32 %v1041, %v1065
        %v1075 = vmul.f32 %v1042, %v1065
        %v1076 = vmul.f32 %v1043, %v1065
        %v1077 = vmul.f32 %v1044, %v1065
        %v1078 = vmul.f32 %v1045, %v1065
        %v1079 = vmul.f32 %v1046, %v1065
        %v1080 = vmul.f32 %v1047, %v1065
        %v1081 = vmul.f32 %v1048, %v1065
        %v1082 = vmul.f32 %v1049, %v1065
        %v1083 = vmul.f32 %v1050, %v1065
        %v1084 = vmul.f32 %v1051, %v1065
        %v1085 = vmul.f32 %v1052, %v1065
        %v1086 = vmul.f32 %v1053, %v1065
        %v1087 = vmul.f32 %v1054, %v1065
        %v1088 = vmul.f32 %v1055, %v1065
        %v1089 = vmul.f32 %v1056, %v1065
        %v1090 = vmul.f32 %v1057, %v1065
        %v1091 = vmul.f32 %v1058, %v1065
        %v1092 = vmul.f32 %v1059, %v1065
        %v1093 = vmul.f32 %v1060, %v1065
        %v1094 = vmul.f32 %v1061, %v1065
        %v1095 = vmul.f32 %v1062, %v1065
        %v1096 = vmul.f32 %v1063, %v1065
        %v1097 = vmul.f32 %v1064, %v1065
        %v1098 = vadd.f32 %v1001, %v1066
        %v1099 = vadd.f32 %v1002, %v1067
        %v1100 = vadd.f32 %v1003, %v1068
        %v1101 = vadd.f32 %v1004, %v1069
        %v1102 = vadd.f32 %v1005, %v1070
        %v1103 = vadd.f32 %v1006, %v1071
        %v1104 = vadd.f32 %v1007, %v1072
        %v1105 = vadd.f32 %v1008, %v1073
        %v1106 = vadd.f32 %v1009, %v1074
        %v1107 = vadd.f32 %v1010, %v1075
        %v1108 = vadd.f32 %v1011, %v1076
        %v1109 = vadd.f32 %v1012, %v1077
        %v1110 = vadd.f32 %v1013, %v1078
        %v1111 = vadd.f32 %v1014, %v1079
        %v1112 = vadd.f32 %v1015, %v1080
        %v1113 = vadd.f32 %v1016, %v1081
        %v1114 = vadd.f32 %v1017, %v1082
        %v1115 = vadd.f32 %v1018, %v1083
        %v1116 = vadd.f32 %v1019, %v1084
        %v1117 = vadd.f32 %v1020, %v1085
        %v1118 = vadd.f32 %v1021, %v1086
        %v1119 = vadd.f32 %v1022, %v1087
        %v1120 = vadd.f32 %v1023, %v1088
        %v1121 = vadd.f32 %v1024, %v1089
        %v1122 = vadd.f32 %v1025, %v1090
        %v1123 = vadd.f32 %v1026, %v1091
        %v1124 = vadd.f32 %v1027, %v1092
        %v1125 = vadd.f32 %v1028, %v1093
        %v1126 = vadd.f32 %v1029, %v1094
        %v1127 = vadd.f32 %v1030, %v1095
        %v1128 = vadd.f32 %v1031, %v1096
        %v1129 = vadd.f32 %v1032, %v1097
        %v1130 = vld [vmem:[%s609 + $0x9] sm:$0xff]
        %v1131 = vld [vmem:[%s609 + $0x11] sm:$0xff]
        %v1132 = vld [vmem:[%s609 + $0x29] sm:$0xff]
        %v1133 = vld [vmem:[%s609 + $0x31] sm:$0xff]
        %v1134 = vld [vmem:[%s609 + $0x49] sm:$0xff]
        %v1135 = vld [vmem:[%s609 + $0x51] sm:$0xff]
        %v1136 = vld [vmem:[%s609 + $0x69] sm:$0xff]
        %v1137 = vld [vmem:[%s609 + $0x71] sm:$0xff]
        %v1138 = vld [vmem:[%s609 + $0x89] sm:$0xff]
        %v1139 = vld [vmem:[%s609 + $0x91] sm:$0xff]
        %v1140 = vld [vmem:[%s609 + $0xa9] sm:$0xff]
        %v1141 = vld [vmem:[%s609 + $0xb1] sm:$0xff]
        %v1142 = vld [vmem:[%s609 + $0xc9] sm:$0xff]
        %v1143 = vld [vmem:[%s609 + $0xd1] sm:$0xff]
        %v1144 = vld [vmem:[%s609 + $0xe9] sm:$0xff]
        %v1145 = vld [vmem:[%s609 + $0xf1] sm:$0xff]
        %v1146 = vld [vmem:[%s609 + $0x109] sm:$0xff]
        %v1147 = vld [vmem:[%s609 + $0x111] sm:$0xff]
        %v1148 = vld [vmem:[%s609 + $0x129] sm:$0xff]
        %v1149 = vld [vmem:[%s609 + $0x131] sm:$0xff]
        %v1150 = vld [vmem:[%s609 + $0x149] sm:$0xff]
        %v1151 = vld [vmem:[%s609 + $0x151] sm:$0xff]
        %v1152 = vld [vmem:[%s609 + $0x169] sm:$0xff]
        %v1153 = vld [vmem:[%s609 + $0x171] sm:$0xff]
        %v1154 = vld [vmem:[%s609 + $0x189] sm:$0xff]
        %v1155 = vld [vmem:[%s609 + $0x191] sm:$0xff]
        %v1156 = vld [vmem:[%s609 + $0x1a9] sm:$0xff]
        %v1157 = vld [vmem:[%s609 + $0x1b1] sm:$0xff]
        %v1158 = vld [vmem:[%s609 + $0x1c9] sm:$0xff]
        %v1159 = vld [vmem:[%s609 + $0x1d1] sm:$0xff]
        %v1160 = vld [vmem:[%s609 + $0x1e9] sm:$0xff]
        %v1161 = vld [vmem:[%s609 + $0x1f1] sm:$0xff]
        %v1162 = vperm.slane %v675, 5
        %v1163 = vmul.f32 %v1130, %v1162
        %v1164 = vmul.f32 %v1131, %v1162
        %v1165 = vmul.f32 %v1132, %v1162
        %v1166 = vmul.f32 %v1133, %v1162
        %v1167 = vmul.f32 %v1134, %v1162
        %v1168 = vmul.f32 %v1135, %v1162
        %v1169 = vmul.f32 %v1136, %v1162
        %v1170 = vmul.f32 %v1137, %v1162
        %v1171 = vmul.f32 %v1138, %v1162
        %v1172 = vmul.f32 %v1139, %v1162
        %v1173 = vmul.f32 %v1140, %v1162
        %v1174 = vmul.f32 %v1141, %v1162
        %v1175 = vmul.f32 %v1142, %v1162
        %v1176 = vmul.f32 %v1143, %v1162
        %v1177 = vmul.f32 %v1144, %v1162
        %v1178 = vmul.f32 %v1145, %v1162
        %v1179 = vmul.f32 %v1146, %v1162
        %v1180 = vmul.f32 %v1147, %v1162
        %v1181 = vmul.f32 %v1148, %v1162
        %v1182 = vmul.f32 %v1149, %v1162
        %v1183 = vmul.f32 %v1150, %v1162
        %v1184 = vmul.f32 %v1151, %v1162
        %v1185 = vmul.f32 %v1152, %v1162
        %v1186 = vmul.f32 %v1153, %v1162
        %v1187 = vmul.f32 %v1154, %v1162
        %v1188 = vmul.f32 %v1155, %v1162
        %v1189 = vmul.f32 %v1156, %v1162
        %v1190 = vmul.f32 %v1157, %v1162
        %v1191 = vmul.f32 %v1158, %v1162
        %v1192 = vmul.f32 %v1159, %v1162
        %v1193 = vmul.f32 %v1160, %v1162
        %v1194 = vmul.f32 %v1161, %v1162
        %v1195 = vadd.f32 %v1098, %v1163
        %v1196 = vadd.f32 %v1099, %v1164
        %v1197 = vadd.f32 %v1100, %v1165
        %v1198 = vadd.f32 %v1101, %v1166
        %v1199 = vadd.f32 %v1102, %v1167
        %v1200 = vadd.f32 %v1103, %v1168
        %v1201 = vadd.f32 %v1104, %v1169
        %v1202 = vadd.f32 %v1105, %v1170
        %v1203 = vadd.f32 %v1106, %v1171
        %v1204 = vadd.f32 %v1107, %v1172
        %v1205 = vadd.f32 %v1108, %v1173
        %v1206 = vadd.f32 %v1109, %v1174
        %v1207 = vadd.f32 %v1110, %v1175
        %v1208 = vadd.f32 %v1111, %v1176
        %v1209 = vadd.f32 %v1112, %v1177
        %v1210 = vadd.f32 %v1113, %v1178
        %v1211 = vadd.f32 %v1114, %v1179
        %v1212 = vadd.f32 %v1115, %v1180
        %v1213 = vadd.f32 %v1116, %v1181
        %v1214 = vadd.f32 %v1117, %v1182
        %v1215 = vadd.f32 %v1118, %v1183
        %v1216 = vadd.f32 %v1119, %v1184
        %v1217 = vadd.f32 %v1120, %v1185
        %v1218 = vadd.f32 %v1121, %v1186
        %v1219 = vadd.f32 %v1122, %v1187
        %v1220 = vadd.f32 %v1123, %v1188
        %v1221 = vadd.f32 %v1124, %v1189
        %v1222 = vadd.f32 %v1125, %v1190
        %v1223 = vadd.f32 %v1126, %v1191
        %v1224 = vadd.f32 %v1127, %v1192
        %v1225 = vadd.f32 %v1128, %v1193
        %v1226 = vadd.f32 %v1129, %v1194
        %s1227 = scalar_lea.vmem [#allocation2], 64
        %v1228 = vld [vmem:[%s1227 + $0x7] sm:$0xff]
        %v1229 = vld [vmem:[%s1227 + $0xf] sm:$0xff]
        %v1230 = vld [vmem:[%s1227 + $0x27] sm:$0xff]
        %v1231 = vld [vmem:[%s1227 + $0x2f] sm:$0xff]
        %v1232 = vld [vmem:[%s1227 + $0x47] sm:$0xff]
        %v1233 = vld [vmem:[%s1227 + $0x4f] sm:$0xff]
        %v1234 = vld [vmem:[%s1227 + $0x67] sm:$0xff]
        %v1235 = vld [vmem:[%s1227 + $0x6f] sm:$0xff]
        %v1236 = vld [vmem:[%s1227 + $0x87] sm:$0xff]
        %v1237 = vld [vmem:[%s1227 + $0x8f] sm:$0xff]
        %v1238 = vld [vmem:[%s1227 + $0xa7] sm:$0xff]
        %v1239 = vld [vmem:[%s1227 + $0xaf] sm:$0xff]
        %v1240 = vld [vmem:[%s1227 + $0xc7] sm:$0xff]
        %v1241 = vld [vmem:[%s1227 + $0xcf] sm:$0xff]
        %v1242 = vld [vmem:[%s1227 + $0xe7] sm:$0xff]
        %v1243 = vld [vmem:[%s1227 + $0xef] sm:$0xff]
        %v1244 = vld [vmem:[%s1227 + $0x107] sm:$0xff]
        %v1245 = vld [vmem:[%s1227 + $0x10f] sm:$0xff]
        %v1246 = vld [vmem:[%s1227 + $0x127] sm:$0xff]
        %v1247 = vld [vmem:[%s1227 + $0x12f] sm:$0xff]
        %v1248 = vld [vmem:[%s1227 + $0x147] sm:$0xff]
        %v1249 = vld [vmem:[%s1227 + $0x14f] sm:$0xff]
        %v1250 = vld [vmem:[%s1227 + $0x167] sm:$0xff]
        %v1251 = vld [vmem:[%s1227 + $0x16f] sm:$0xff]
        %v1252 = vld [vmem:[%s1227 + $0x187] sm:$0xff]
        %v1253 = vld [vmem:[%s1227 + $0x18f] sm:$0xff]
        %v1254 = vld [vmem:[%s1227 + $0x1a7] sm:$0xff]
        %v1255 = vld [vmem:[%s1227 + $0x1af] sm:$0xff]
        %v1256 = vld [vmem:[%s1227 + $0x1c7] sm:$0xff]
        %v1257 = vld [vmem:[%s1227 + $0x1cf] sm:$0xff]
        %v1258 = vld [vmem:[%s1227 + $0x1e7] sm:$0xff]
        %v1259 = vld [vmem:[%s1227 + $0x1ef] sm:$0xff]
        %v1260 = vperm.slane %v675, 6
        %v1261 = vmul.f32 %v1228, %v1260
        %v1262 = vmul.f32 %v1229, %v1260
        %v1263 = vmul.f32 %v1230, %v1260
        %v1264 = vmul.f32 %v1231, %v1260
        %v1265 = vmul.f32 %v1232, %v1260
        %v1266 = vmul.f32 %v1233, %v1260
        %v1267 = vmul.f32 %v1234, %v1260
        %v1268 = vmul.f32 %v1235, %v1260
        %v1269 = vmul.f32 %v1236, %v1260
        %v1270 = vmul.f32 %v1237, %v1260
        %v1271 = vmul.f32 %v1238, %v1260
        %v1272 = vmul.f32 %v1239, %v1260
        %v1273 = vmul.f32 %v1240, %v1260
        %v1274 = vmul.f32 %v1241, %v1260
        %v1275 = vmul.f32 %v1242, %v1260
        %v1276 = vmul.f32 %v1243, %v1260
        %v1277 = vmul.f32 %v1244, %v1260
        %v1278 = vmul.f32 %v1245, %v1260
        %v1279 = vmul.f32 %v1246, %v1260
        %v1280 = vmul.f32 %v1247, %v1260
        %v1281 = vmul.f32 %v1248, %v1260
        %v1282 = vmul.f32 %v1249, %v1260
        %v1283 = vmul.f32 %v1250, %v1260
        %v1284 = vmul.f32 %v1251, %v1260
        %v1285 = vmul.f32 %v1252, %v1260
        %v1286 = vmul.f32 %v1253, %v1260
        %v1287 = vmul.f32 %v1254, %v1260
        %v1288 = vmul.f32 %v1255, %v1260
        %v1289 = vmul.f32 %v1256, %v1260
        %v1290 = vmul.f32 %v1257, %v1260
        %v1291 = vmul.f32 %v1258, %v1260
        %v1292 = vmul.f32 %v1259, %v1260
        %v1293 = vadd.f32 %v1195, %v1261
        %v1294 = vadd.f32 %v1196, %v1262
        %v1295 = vadd.f32 %v1197, %v1263
        %v1296 = vadd.f32 %v1198, %v1264
        %v1297 = vadd.f32 %v1199, %v1265
        %v1298 = vadd.f32 %v1200, %v1266
        %v1299 = vadd.f32 %v1201, %v1267
        %v1300 = vadd.f32 %v1202, %v1268
        %v1301 = vadd.f32 %v1203, %v1269
        %v1302 = vadd.f32 %v1204, %v1270
        %v1303 = vadd.f32 %v1205, %v1271
        %v1304 = vadd.f32 %v1206, %v1272
        %v1305 = vadd.f32 %v1207, %v1273
        %v1306 = vadd.f32 %v1208, %v1274
        %v1307 = vadd.f32 %v1209, %v1275
        %v1308 = vadd.f32 %v1210, %v1276
        %v1309 = vadd.f32 %v1211, %v1277
        %v1310 = vadd.f32 %v1212, %v1278
        %v1311 = vadd.f32 %v1213, %v1279
        %v1312 = vadd.f32 %v1214, %v1280
        %v1313 = vadd.f32 %v1215, %v1281
        %v1314 = vadd.f32 %v1216, %v1282
        %v1315 = vadd.f32 %v1217, %v1283
        %v1316 = vadd.f32 %v1218, %v1284
        %v1317 = vadd.f32 %v1219, %v1285
        %v1318 = vadd.f32 %v1220, %v1286
        %v1319 = vadd.f32 %v1221, %v1287
        %v1320 = vadd.f32 %v1222, %v1288
        %v1321 = vadd.f32 %v1223, %v1289
        %v1322 = vadd.f32 %v1224, %v1290
        %v1323 = vadd.f32 %v1225, %v1291
        %v1324 = vadd.f32 %v1226, %v1292
        %v1325 = vld [vmem:[%s1227 + $0x8] sm:$0xff]
        %v1326 = vld [vmem:[%s1227 + $0x10] sm:$0xff]
        %v1327 = vld [vmem:[%s1227 + $0x28] sm:$0xff]
        %v1328 = vld [vmem:[%s1227 + $0x30] sm:$0xff]
        %v1329 = vld [vmem:[%s1227 + $0x48] sm:$0xff]
        %v1330 = vld [vmem:[%s1227 + $0x50] sm:$0xff]
        %v1331 = vld [vmem:[%s1227 + $0x68] sm:$0xff]
        %v1332 = vld [vmem:[%s1227 + $0x70] sm:$0xff]
        %v1333 = vld [vmem:[%s1227 + $0x88] sm:$0xff]
        %v1334 = vld [vmem:[%s1227 + $0x90] sm:$0xff]
        %v1335 = vld [vmem:[%s1227 + $0xa8] sm:$0xff]
        %v1336 = vld [vmem:[%s1227 + $0xb0] sm:$0xff]
        %v1337 = vld [vmem:[%s1227 + $0xc8] sm:$0xff]
        %v1338 = vld [vmem:[%s1227 + $0xd0] sm:$0xff]
        %v1339 = vld [vmem:[%s1227 + $0xe8] sm:$0xff]
        %v1340 = vld [vmem:[%s1227 + $0xf0] sm:$0xff]
        %v1341 = vld [vmem:[%s1227 + $0x108] sm:$0xff]
        %v1342 = vld [vmem:[%s1227 + $0x110] sm:$0xff]
        %v1343 = vld [vmem:[%s1227 + $0x128] sm:$0xff]
        %v1344 = vld [vmem:[%s1227 + $0x130] sm:$0xff]
        %v1345 = vld [vmem:[%s1227 + $0x148] sm:$0xff]
        %v1346 = vld [vmem:[%s1227 + $0x150] sm:$0xff]
        %v1347 = vld [vmem:[%s1227 + $0x168] sm:$0xff]
        %v1348 = vld [vmem:[%s1227 + $0x170] sm:$0xff]
        %v1349 = vld [vmem:[%s1227 + $0x188] sm:$0xff]
        %v1350 = vld [vmem:[%s1227 + $0x190] sm:$0xff]
        %v1351 = vld [vmem:[%s1227 + $0x1a8] sm:$0xff]
        %v1352 = vld [vmem:[%s1227 + $0x1b0] sm:$0xff]
        %v1353 = vld [vmem:[%s1227 + $0x1c8] sm:$0xff]
        %v1354 = vld [vmem:[%s1227 + $0x1d0] sm:$0xff]
        %v1355 = vld [vmem:[%s1227 + $0x1e8] sm:$0xff]
        %v1356 = vld [vmem:[%s1227 + $0x1f0] sm:$0xff]
        %v1357 = vperm.slane %v675, 7
        %v1358 = vmul.f32 %v1325, %v1357
        %v1359 = vmul.f32 %v1326, %v1357
        %v1360 = vmul.f32 %v1327, %v1357
        %v1361 = vmul.f32 %v1328, %v1357
        %v1362 = vmul.f32 %v1329, %v1357
        %v1363 = vmul.f32 %v1330, %v1357
        %v1364 = vmul.f32 %v1331, %v1357
        %v1365 = vmul.f32 %v1332, %v1357
        %v1366 = vmul.f32 %v1333, %v1357
        %v1367 = vmul.f32 %v1334, %v1357
        %v1368 = vmul.f32 %v1335, %v1357
        %v1369 = vmul.f32 %v1336, %v1357
        %v1370 = vmul.f32 %v1337, %v1357
        %v1371 = vmul.f32 %v1338, %v1357
        %v1372 = vmul.f32 %v1339, %v1357
        %v1373 = vmul.f32 %v1340, %v1357
        %v1374 = vmul.f32 %v1341, %v1357
        %v1375 = vmul.f32 %v1342, %v1357
        %v1376 = vmul.f32 %v1343, %v1357
        %v1377 = vmul.f32 %v1344, %v1357
        %v1378 = vmul.f32 %v1345, %v1357
        %v1379 = vmul.f32 %v1346, %v1357
        %v1380 = vmul.f32 %v1347, %v1357
        %v1381 = vmul.f32 %v1348, %v1357
        %v1382 = vmul.f32 %v1349, %v1357
        %v1383 = vmul.f32 %v1350, %v1357
        %v1384 = vmul.f32 %v1351, %v1357
        %v1385 = vmul.f32 %v1352, %v1357
        %v1386 = vmul.f32 %v1353, %v1357
        %v1387 = vmul.f32 %v1354, %v1357
        %v1388 = vmul.f32 %v1355, %v1357
        %v1389 = vmul.f32 %v1356, %v1357
        %v1390 = vadd.f32 %v1293, %v1358
        %v1391 = vadd.f32 %v1294, %v1359
        %v1392 = vadd.f32 %v1295, %v1360
        %v1393 = vadd.f32 %v1296, %v1361
        %v1394 = vadd.f32 %v1297, %v1362
        %v1395 = vadd.f32 %v1298, %v1363
        %v1396 = vadd.f32 %v1299, %v1364
        %v1397 = vadd.f32 %v1300, %v1365
        %v1398 = vadd.f32 %v1301, %v1366
        %v1399 = vadd.f32 %v1302, %v1367
        %v1400 = vadd.f32 %v1303, %v1368
        %v1401 = vadd.f32 %v1304, %v1369
        %v1402 = vadd.f32 %v1305, %v1370
        %v1403 = vadd.f32 %v1306, %v1371
        %v1404 = vadd.f32 %v1307, %v1372
        %v1405 = vadd.f32 %v1308, %v1373
        %v1406 = vadd.f32 %v1309, %v1374
        %v1407 = vadd.f32 %v1310, %v1375
        %v1408 = vadd.f32 %v1311, %v1376
        %v1409 = vadd.f32 %v1312, %v1377
        %v1410 = vadd.f32 %v1313, %v1378
        %v1411 = vadd.f32 %v1314, %v1379
        %v1412 = vadd.f32 %v1315, %v1380
        %v1413 = vadd.f32 %v1316, %v1381
        %v1414 = vadd.f32 %v1317, %v1382
        %v1415 = vadd.f32 %v1318, %v1383
        %v1416 = vadd.f32 %v1319, %v1384
        %v1417 = vadd.f32 %v1320, %v1385
        %v1418 = vadd.f32 %v1321, %v1386
        %v1419 = vadd.f32 %v1322, %v1387
        %v1420 = vadd.f32 %v1323, %v1388
        %v1421 = vadd.f32 %v1324, %v1389
        %v1422 = vld [vmem:[%s1227 + $0x9] sm:$0xff]
        %v1423 = vld [vmem:[%s1227 + $0x11] sm:$0xff]
        %v1424 = vld [vmem:[%s1227 + $0x29] sm:$0xff]
        %v1425 = vld [vmem:[%s1227 + $0x31] sm:$0xff]
        %v1426 = vld [vmem:[%s1227 + $0x49] sm:$0xff]
        %v1427 = vld [vmem:[%s1227 + $0x51] sm:$0xff]
        %v1428 = vld [vmem:[%s1227 + $0x69] sm:$0xff]
        %v1429 = vld [vmem:[%s1227 + $0x71] sm:$0xff]
        %v1430 = vld [vmem:[%s1227 + $0x89] sm:$0xff]
        %v1431 = vld [vmem:[%s1227 + $0x91] sm:$0xff]
        %v1432 = vld [vmem:[%s1227 + $0xa9] sm:$0xff]
        %v1433 = vld [vmem:[%s1227 + $0xb1] sm:$0xff]
        %v1434 = vld [vmem:[%s1227 + $0xc9] sm:$0xff]
        %v1435 = vld [vmem:[%s1227 + $0xd1] sm:$0xff]
        %v1436 = vld [vmem:[%s1227 + $0xe9] sm:$0xff]
        %v1437 = vld [vmem:[%s1227 + $0xf1] sm:$0xff]
        %v1438 = vld [vmem:[%s1227 + $0x109] sm:$0xff]
        %v1439 = vld [vmem:[%s1227 + $0x111] sm:$0xff]
        %v1440 = vld [vmem:[%s1227 + $0x129] sm:$0xff]
        %v1441 = vld [vmem:[%s1227 + $0x131] sm:$0xff]
        %v1442 = vld [vmem:[%s1227 + $0x149] sm:$0xff]
        %v1443 = vld [vmem:[%s1227 + $0x151] sm:$0xff]
        %v1444 = vld [vmem:[%s1227 + $0x169] sm:$0xff]
        %v1445 = vld [vmem:[%s1227 + $0x171] sm:$0xff]
        %v1446 = vld [vmem:[%s1227 + $0x189] sm:$0xff]
        %v1447 = vld [vmem:[%s1227 + $0x191] sm:$0xff]
        %v1448 = vld [vmem:[%s1227 + $0x1a9] sm:$0xff]
        %v1449 = vld [vmem:[%s1227 + $0x1b1] sm:$0xff]
        %v1450 = vld [vmem:[%s1227 + $0x1c9] sm:$0xff]
        %v1451 = vld [vmem:[%s1227 + $0x1d1] sm:$0xff]
        %v1452 = vld [vmem:[%s1227 + $0x1e9] sm:$0xff]
        %v1453 = vld [vmem:[%s1227 + $0x1f1] sm:$0xff]
        %v1454 = vperm.slane %v676, 0
        %v1455 = vmul.f32 %v1422, %v1454
        %v1456 = vmul.f32 %v1423, %v1454
        %v1457 = vmul.f32 %v1424, %v1454
        %v1458 = vmul.f32 %v1425, %v1454
        %v1459 = vmul.f32 %v1426, %v1454
        %v1460 = vmul.f32 %v1427, %v1454
        %v1461 = vmul.f32 %v1428, %v1454
        %v1462 = vmul.f32 %v1429, %v1454
        %v1463 = vmul.f32 %v1430, %v1454
        %v1464 = vmul.f32 %v1431, %v1454
        %v1465 = vmul.f32 %v1432, %v1454
        %v1466 = vmul.f32 %v1433, %v1454
        %v1467 = vmul.f32 %v1434, %v1454
        %v1468 = vmul.f32 %v1435, %v1454
        %v1469 = vmul.f32 %v1436, %v1454
        %v1470 = vmul.f32 %v1437, %v1454
        %v1471 = vmul.f32 %v1438, %v1454
        %v1472 = vmul.f32 %v1439, %v1454
        %v1473 = vmul.f32 %v1440, %v1454
        %v1474 = vmul.f32 %v1441, %v1454
        %v1475 = vmul.f32 %v1442, %v1454
        %v1476 = vmul.f32 %v1443, %v1454
        %v1477 = vmul.f32 %v1444, %v1454
        %v1478 = vmul.f32 %v1445, %v1454
        %v1479 = vmul.f32 %v1446, %v1454
        %v1480 = vmul.f32 %v1447, %v1454
        %v1481 = vmul.f32 %v1448, %v1454
        %v1482 = vmul.f32 %v1449, %v1454
        %v1483 = vmul.f32 %v1450, %v1454
        %v1484 = vmul.f32 %v1451, %v1454
        %v1485 = vmul.f32 %v1452, %v1454
        %v1486 = vmul.f32 %v1453, %v1454
        %v1487 = vadd.f32 %v1390, %v1455
        %v1488 = vadd.f32 %v1391, %v1456
        %v1489 = vadd.f32 %v1392, %v1457
        %v1490 = vadd.f32 %v1393, %v1458
        %v1491 = vadd.f32 %v1394, %v1459
        %v1492 = vadd.f32 %v1395, %v1460
        %v1493 = vadd.f32 %v1396, %v1461
        %v1494 = vadd.f32 %v1397, %v1462
        %v1495 = vadd.f32 %v1398, %v1463
        %v1496 = vadd.f32 %v1399, %v1464
        %v1497 = vadd.f32 %v1400, %v1465
        %v1498 = vadd.f32 %v1401, %v1466
        %v1499 = vadd.f32 %v1402, %v1467
        %v1500 = vadd.f32 %v1403, %v1468
        %v1501 = vadd.f32 %v1404, %v1469
        %v1502 = vadd.f32 %v1405, %v1470
        %v1503 = vadd.f32 %v1406, %v1471
        %v1504 = vadd.f32 %v1407, %v1472
        %v1505 = vadd.f32 %v1408, %v1473
        %v1506 = vadd.f32 %v1409, %v1474
        %v1507 = vadd.f32 %v1410, %v1475
        %v1508 = vadd.f32 %v1411, %v1476
        %v1509 = vadd.f32 %v1412, %v1477
        %v1510 = vadd.f32 %v1413, %v1478
        %v1511 = vadd.f32 %v1414, %v1479
        %v1512 = vadd.f32 %v1415, %v1480
        %v1513 = vadd.f32 %v1416, %v1481
        %v1514 = vadd.f32 %v1417, %v1482
        %v1515 = vadd.f32 %v1418, %v1483
        %v1516 = vadd.f32 %v1419, %v1484
        %v1517 = vadd.f32 %v1420, %v1485
        %v1518 = vadd.f32 %v1421, %v1486
        %v1519 = vpack.c.bf16 %v1488, %v1487
        %v1520 = vpack.c.bf16 %v1490, %v1489
        %v1521 = vpack.c.bf16 %v1492, %v1491
        %v1522 = vpack.c.bf16 %v1494, %v1493
        %v1523 = vpack.c.bf16 %v1496, %v1495
        %v1524 = vpack.c.bf16 %v1498, %v1497
        %v1525 = vpack.c.bf16 %v1500, %v1499
        %v1526 = vpack.c.bf16 %v1502, %v1501
        %v1527 = vpack.c.bf16 %v1504, %v1503
        %v1528 = vpack.c.bf16 %v1506, %v1505
        %v1529 = vpack.c.bf16 %v1508, %v1507
        %v1530 = vpack.c.bf16 %v1510, %v1509
        %v1531 = vpack.c.bf16 %v1512, %v1511
        %v1532 = vpack.c.bf16 %v1514, %v1513
        %v1533 = vpack.c.bf16 %v1516, %v1515
        %v1534 = vpack.c.bf16 %v1518, %v1517
        %v1535 = vld [vmem:[%s4] sm:$0x3]
        %v1536 = vld [vmem:[%s5] sm:$0x1]
        %v1538 = vperm.slane %v1536, 0
        %v1541 = vsel %vm427, %v1519, 0
        %v1544 = vsel %vm427, %v1520, 0
        %v1547 = vsel %vm427, %v1521, 0
        %v1550 = vsel %vm427, %v1522, 0
        %v1553 = vsel %vm427, %v1523, 0
        %v1556 = vsel %vm427, %v1524, 0
        %v1559 = vsel %vm427, %v1525, 0
        %v1562 = vsel %vm427, %v1526, 0
        %v1565 = vsel %vm427, %v1527, 0
        %v1568 = vsel %vm427, %v1528, 0
        %v1571 = vsel %vm427, %v1529, 0
        %v1574 = vsel %vm427, %v1530, 0
        %v1577 = vsel %vm427, %v1531, 0
        %v1580 = vsel %vm427, %v1532, 0
        %v1583 = vsel %vm427, %v1533, 0
        %v1586 = vsel %vm427, %v1534, 0
        %v1589 = vsel %vm476, %v1535, 0
        %1591 = vmatpush.bf16.msra.mxu0 0
        %1592 = vmatpush.bf16.msra.mxu0 0
        %1593 = vmatpush.bf16.msra.mxu0 0
        %1594 = vmatpush.bf16.msra.mxu0 0
        %1595 = vmatpush.bf16.msra.mxu0 0
        %1596 = vmatpush.bf16.msra.mxu0 0
        %1597 = vmatpush.bf16.msra.mxu0 0
        %1598 = vmatpush.bf16.msra.mxu0 %v1589
        %1599 = vmatmul.bf16.gmra.mxu0 %v1541
        %v1600 = vpop.f32.mrf.mxu0
        %v1601 = vadd.f32 %v1538, %v1600
        %v1602 = vpop.f32.mrf.mxu0
        %v1603 = vadd.f32 %v1538, %v1602
        %1604 = vmatmul.bf16.gmra.mxu0 %v1544
        %v1605 = vpop.f32.mrf.mxu0
        %v1606 = vadd.f32 %v1538, %v1605
        %v1607 = vpop.f32.mrf.mxu0
        %v1608 = vadd.f32 %v1538, %v1607
        %1609 = vmatmul.bf16.gmra.mxu0 %v1547
        %v1610 = vpop.f32.mrf.mxu0
        %v1611 = vadd.f32 %v1538, %v1610
        %v1612 = vpop.f32.mrf.mxu0
        %v1613 = vadd.f32 %v1538, %v1612
        %1614 = vmatmul.bf16.gmra.mxu0 %v1550
        %v1615 = vpop.f32.mrf.mxu0
        %v1616 = vadd.f32 %v1538, %v1615
        %v1617 = vpop.f32.mrf.mxu0
        %v1618 = vadd.f32 %v1538, %v1617
        %1619 = vmatmul.bf16.gmra.mxu0 %v1553
        %v1620 = vpop.f32.mrf.mxu0
        %v1621 = vadd.f32 %v1538, %v1620
        %v1622 = vpop.f32.mrf.mxu0
        %v1623 = vadd.f32 %v1538, %v1622
        %1624 = vmatmul.bf16.gmra.mxu0 %v1556
        %v1625 = vpop.f32.mrf.mxu0
        %v1626 = vadd.f32 %v1538, %v1625
        %v1627 = vpop.f32.mrf.mxu0
        %v1628 = vadd.f32 %v1538, %v1627
        %1629 = vmatmul.bf16.gmra.mxu0 %v1559
        %v1630 = vpop.f32.mrf.mxu0
        %v1631 = vadd.f32 %v1538, %v1630
        %v1632 = vpop.f32.mrf.mxu0
        %v1633 = vadd.f32 %v1538, %v1632
        %1634 = vmatmul.bf16.gmra.mxu0 %v1562
        %v1635 = vpop.f32.mrf.mxu0
        %v1636 = vadd.f32 %v1538, %v1635
        %v1637 = vpop.f32.mrf.mxu0
        %v1638 = vadd.f32 %v1538, %v1637
        %1639 = vmatmul.bf16.gmra.mxu0 %v1565
        %v1640 = vpop.f32.mrf.mxu0
        %v1641 = vadd.f32 %v1538, %v1640
        %v1642 = vpop.f32.mrf.mxu0
        %v1643 = vadd.f32 %v1538, %v1642
        %1644 = vmatmul.bf16.gmra.mxu0 %v1568
        %v1645 = vpop.f32.mrf.mxu0
        %v1646 = vadd.f32 %v1538, %v1645
        %v1647 = vpop.f32.mrf.mxu0
        %v1648 = vadd.f32 %v1538, %v1647
        %1649 = vmatmul.bf16.gmra.mxu0 %v1571
        %v1650 = vpop.f32.mrf.mxu0
        %v1651 = vadd.f32 %v1538, %v1650
        %v1652 = vpop.f32.mrf.mxu0
        %v1653 = vadd.f32 %v1538, %v1652
        %1654 = vmatmul.bf16.gmra.mxu0 %v1574
        %v1655 = vpop.f32.mrf.mxu0
        %v1656 = vadd.f32 %v1538, %v1655
        %v1657 = vpop.f32.mrf.mxu0
        %v1658 = vadd.f32 %v1538, %v1657
        %1659 = vmatmul.bf16.gmra.mxu0 %v1577
        %v1660 = vpop.f32.mrf.mxu0
        %v1661 = vadd.f32 %v1538, %v1660
        %v1662 = vpop.f32.mrf.mxu0
        %v1663 = vadd.f32 %v1538, %v1662
        %1664 = vmatmul.bf16.gmra.mxu0 %v1580
        %v1665 = vpop.f32.mrf.mxu0
        %v1666 = vadd.f32 %v1538, %v1665
        %v1667 = vpop.f32.mrf.mxu0
        %v1668 = vadd.f32 %v1538, %v1667
        %1669 = vmatmul.bf16.gmra.mxu0 %v1583
        %v1670 = vpop.f32.mrf.mxu0
        %v1671 = vadd.f32 %v1538, %v1670
        %v1672 = vpop.f32.mrf.mxu0
        %v1673 = vadd.f32 %v1538, %v1672
        %1674 = vmatmul.bf16.gmra.mxu0 %v1586
        %v1675 = vpop.f32.mrf.mxu0
        %v1676 = vadd.f32 %v1538, %v1675
        %v1677 = vpop.f32.mrf.mxu0
        %v1678 = vadd.f32 %v1538, %v1677
        %1679 = vdwg.mxu0
        %v1680 = vmax.f32 %v1601, 0.0
        %v1681 = vmax.f32 %v1603, 0.0
        %v1682 = vmax.f32 %v1606, 0.0
        %v1683 = vmax.f32 %v1608, 0.0
        %v1684 = vmax.f32 %v1611, 0.0
        %v1685 = vmax.f32 %v1613, 0.0
        %v1686 = vmax.f32 %v1616, 0.0
        %v1687 = vmax.f32 %v1618, 0.0
        %v1688 = vmax.f32 %v1621, 0.0
        %v1689 = vmax.f32 %v1623, 0.0
        %v1690 = vmax.f32 %v1626, 0.0
        %v1691 = vmax.f32 %v1628, 0.0
        %v1692 = vmax.f32 %v1631, 0.0
        %v1693 = vmax.f32 %v1633, 0.0
        %v1694 = vmax.f32 %v1636, 0.0
        %v1695 = vmax.f32 %v1638, 0.0
        %v1696 = vmax.f32 %v1641, 0.0
        %v1697 = vmax.f32 %v1643, 0.0
        %v1698 = vmax.f32 %v1646, 0.0
        %v1699 = vmax.f32 %v1648, 0.0
        %v1700 = vmax.f32 %v1651, 0.0
        %v1701 = vmax.f32 %v1653, 0.0
        %v1702 = vmax.f32 %v1656, 0.0
        %v1703 = vmax.f32 %v1658, 0.0
        %v1704 = vmax.f32 %v1661, 0.0
        %v1705 = vmax.f32 %v1663, 0.0
        %v1706 = vmax.f32 %v1666, 0.0
        %v1707 = vmax.f32 %v1668, 0.0
        %v1708 = vmax.f32 %v1671, 0.0
        %v1709 = vmax.f32 %v1673, 0.0
        %v1710 = vmax.f32 %v1676, 0.0
        %v1711 = vmax.f32 %v1678, 0.0
        %v1712 = vld [vmem:[%s6] sm:$0x3]
        %v1714 = vsel %vm427, %v379, 0
        %v1717 = vsel %vm427, %v380, 0
        %v1720 = vsel %vm427, %v381, 0
        %v1723 = vsel %vm427, %v382, 0
        %v1726 = vsel %vm427, %v383, 0
        %v1729 = vsel %vm427, %v384, 0
        %v1732 = vsel %vm427, %v385, 0
        %v1735 = vsel %vm427, %v386, 0
        %v1738 = vsel %vm427, %v387, 0
        %v1741 = vsel %vm427, %v388, 0
        %v1744 = vsel %vm427, %v389, 0
        %v1747 = vsel %vm427, %v390, 0
        %v1750 = vsel %vm427, %v391, 0
        %v1753 = vsel %vm427, %v392, 0
        %v1756 = vsel %vm427, %v393, 0
        %v1759 = vsel %vm427, %v394, 0
        %v1762 = vsel %vm476, %v1712, 0
        %1764 = vmatpush.bf16.msra.mxu0 0
        %1765 = vmatpush.bf16.msra.mxu0 0
        %1766 = vmatpush.bf16.msra.mxu0 0
        %1767 = vmatpush.bf16.msra.mxu0 0
        %1768 = vmatpush.bf16.msra.mxu0 0
        %1769 = vmatpush.bf16.msra.mxu0 0
        %1770 = vmatpush.bf16.msra.mxu0 0
        %1771 = vmatpush.bf16.msra.mxu0 %v1762
        %1772 = vmatmul.bf16.gmra.mxu0 %v1714
        %v1773 = vpop.f32.mrf.mxu0
        %v1774 = vadd.f32 %v1680, %v1773
        %v1775 = vpop.f32.mrf.mxu0
        %v1776 = vadd.f32 %v1681, %v1775
        %1777 = vmatmul.bf16.gmra.mxu0 %v1717
        %v1778 = vpop.f32.mrf.mxu0
        %v1779 = vadd.f32 %v1682, %v1778
        %v1780 = vpop.f32.mrf.mxu0
        %v1781 = vadd.f32 %v1683, %v1780
        %1782 = vmatmul.bf16.gmra.mxu0 %v1720
        %v1783 = vpop.f32.mrf.mxu0
        %v1784 = vadd.f32 %v1684, %v1783
        %v1785 = vpop.f32.mrf.mxu0
        %v1786 = vadd.f32 %v1685, %v1785
        %1787 = vmatmul.bf16.gmra.mxu0 %v1723
        %v1788 = vpop.f32.mrf.mxu0
        %v1789 = vadd.f32 %v1686, %v1788
        %v1790 = vpop.f32.mrf.mxu0
        %v1791 = vadd.f32 %v1687, %v1790
        %1792 = vmatmul.bf16.gmra.mxu0 %v1726
        %v1793 = vpop.f32.mrf.mxu0
        %v1794 = vadd.f32 %v1688, %v1793
        %v1795 = vpop.f32.mrf.mxu0
        %v1796 = vadd.f32 %v1689, %v1795
        %1797 = vmatmul.bf16.gmra.mxu0 %v1729
        %v1798 = vpop.f32.mrf.mxu0
        %v1799 = vadd.f32 %v1690, %v1798
        %v1800 = vpop.f32.mrf.mxu0
        %v1801 = vadd.f32 %v1691, %v1800
        %1802 = vmatmul.bf16.gmra.mxu0 %v1732
        %v1803 = vpop.f32.mrf.mxu0
        %v1804 = vadd.f32 %v1692, %v1803
        %v1805 = vpop.f32.mrf.mxu0
        %v1806 = vadd.f32 %v1693, %v1805
        %1807 = vmatmul.bf16.gmra.mxu0 %v1735
        %v1808 = vpop.f32.mrf.mxu0
        %v1809 = vadd.f32 %v1694, %v1808
        %v1810 = vpop.f32.mrf.mxu0
        %v1811 = vadd.f32 %v1695, %v1810
        %1812 = vmatmul.bf16.gmra.mxu0 %v1738
        %v1813 = vpop.f32.mrf.mxu0
        %v1814 = vadd.f32 %v1696, %v1813
        %v1815 = vpop.f32.mrf.mxu0
        %v1816 = vadd.f32 %v1697, %v1815
        %1817 = vmatmul.bf16.gmra.mxu0 %v1741
        %v1818 = vpop.f32.mrf.mxu0
        %v1819 = vadd.f32 %v1698, %v1818
        %v1820 = vpop.f32.mrf.mxu0
        %v1821 = vadd.f32 %v1699, %v1820
        %1822 = vmatmul.bf16.gmra.mxu0 %v1744
        %v1823 = vpop.f32.mrf.mxu0
        %v1824 = vadd.f32 %v1700, %v1823
        %v1825 = vpop.f32.mrf.mxu0
        %v1826 = vadd.f32 %v1701, %v1825
        %1827 = vmatmul.bf16.gmra.mxu0 %v1747
        %v1828 = vpop.f32.mrf.mxu0
        %v1829 = vadd.f32 %v1702, %v1828
        %v1830 = vpop.f32.mrf.mxu0
        %v1831 = vadd.f32 %v1703, %v1830
        %1832 = vmatmul.bf16.gmra.mxu0 %v1750
        %v1833 = vpop.f32.mrf.mxu0
        %v1834 = vadd.f32 %v1704, %v1833
        %v1835 = vpop.f32.mrf.mxu0
        %v1836 = vadd.f32 %v1705, %v1835
        %1837 = vmatmul.bf16.gmra.mxu0 %v1753
        %v1838 = vpop.f32.mrf.mxu0
        %v1839 = vadd.f32 %v1706, %v1838
        %v1840 = vpop.f32.mrf.mxu0
        %v1841 = vadd.f32 %v1707, %v1840
        %1842 = vmatmul.bf16.gmra.mxu0 %v1756
        %v1843 = vpop.f32.mrf.mxu0
        %v1844 = vadd.f32 %v1708, %v1843
        %v1845 = vpop.f32.mrf.mxu0
        %v1846 = vadd.f32 %v1709, %v1845
        %1847 = vmatmul.bf16.gmra.mxu0 %v1759
        %v1848 = vpop.f32.mrf.mxu0
        %v1849 = vadd.f32 %v1710, %v1848
        %v1850 = vpop.f32.mrf.mxu0
        %v1851 = vadd.f32 %v1711, %v1850
        %1852 = vdwg.mxu0
        %vm1853 = vcmask 64512
        %1854 = vst.msk [vmem:[%s271] sm:$0xff] %vm1853, %v1774
        %1855 = vst.msk [vmem:[%s271 + $0x8] sm:$0xff] %vm1853, %v1776
        %1858 = vrot.lane.b32.xlu0 %v1779, 8
        %v1859 = vpop.permute.xlu0 %1858
        %1860 = vrot.lane.b32.xlu0 %v1781, 8
        %v1861 = vpop.permute.xlu0 %1860
        %vm1864 = vcmask 130112
        %1865 = vst.msk [vmem:[%s271] sm:$0xff] %vm1864, %v1859
        %1866 = vst.msk [vmem:[%s271 + $0x8] sm:$0xff] %vm1864, %v1861
        %1869 = vrot.lane.b32.xlu0 %v1784, 16
        %v1870 = vpop.permute.xlu0 %1869
        %1871 = vrot.lane.b32.xlu0 %v1786, 16
        %v1872 = vpop.permute.xlu0 %1871
        %vm1875 = vcmask 195712
        %1876 = vst.msk [vmem:[%s271] sm:$0xff] %vm1875, %v1870
        %1877 = vst.msk [vmem:[%s271 + $0x8] sm:$0xff] %vm1875, %v1872
        %1880 = vrot.lane.b32.xlu0 %v1789, 24
        %v1881 = vpop.permute.xlu0 %1880
        %1882 = vrot.lane.b32.xlu0 %v1791, 24
        %v1883 = vpop.permute.xlu0 %1882
        %vm1886 = vcmask 261312
        %1887 = vst.msk [vmem:[%s271] sm:$0xff] %vm1886, %v1881
        %1888 = vst.msk [vmem:[%s271 + $0x8] sm:$0xff] %vm1886, %v1883
        %1891 = vrot.lane.b32.xlu0 %v1794, 32
        %v1892 = vpop.permute.xlu0 %1891
        %1893 = vrot.lane.b32.xlu0 %v1796, 32
        %v1894 = vpop.permute.xlu0 %1893
        %vm1897 = vcmask 326912
        %1898 = vst.msk [vmem:[%s271] sm:$0xff] %vm1897, %v1892
        %1899 = vst.msk [vmem:[%s271 + $0x8] sm:$0xff] %vm1897, %v1894
        %1902 = vrot.lane.b32.xlu0 %v1799, 40
        %v1903 = vpop.permute.xlu0 %1902
        %1904 = vrot.lane.b32.xlu0 %v1801, 40
        %v1905 = vpop.permute.xlu0 %1904
        %vm1908 = vcmask 392512
        %1909 = vst.msk [vmem:[%s271] sm:$0xff] %vm1908, %v1903
        %1910 = vst.msk [vmem:[%s271 + $0x8] sm:$0xff] %vm1908, %v1905
        %1913 = vrot.lane.b32.xlu0 %v1804, 48
        %v1914 = vpop.permute.xlu0 %1913
        %1915 = vrot.lane.b32.xlu0 %v1806, 48
        %v1916 = vpop.permute.xlu0 %1915
        %vm1919 = vcmask 458112
        %1920 = vst.msk [vmem:[%s271] sm:$0xff] %vm1919, %v1914
        %1921 = vst.msk [vmem:[%s271 + $0x8] sm:$0xff] %vm1919, %v1916
        %1924 = vrot.lane.b32.xlu0 %v1809, 56
        %v1925 = vpop.permute.xlu0 %1924
        %1926 = vrot.lane.b32.xlu0 %v1811, 56
        %v1927 = vpop.permute.xlu0 %1926
        %vm1930 = vcmask 523712
        %1931 = vst.msk [vmem:[%s271] sm:$0xff] %vm1930, %v1925
        %1932 = vst.msk [vmem:[%s271 + $0x8] sm:$0xff] %vm1930, %v1927
        %1935 = vrot.lane.b32.xlu0 %v1814, 64
        %v1936 = vpop.permute.xlu0 %1935
        %1937 = vrot.lane.b32.xlu0 %v1816, 64
        %v1938 = vpop.permute.xlu0 %1937
        %vm1941 = vcmask 589312
        %1942 = vst.msk [vmem:[%s271] sm:$0xff] %vm1941, %v1936
        %1943 = vst.msk [vmem:[%s271 + $0x8] sm:$0xff] %vm1941, %v1938
        %1946 = vrot.lane.b32.xlu0 %v1819, 72
        %v1947 = vpop.permute.xlu0 %1946
        %1948 = vrot.lane.b32.xlu0 %v1821, 72
        %v1949 = vpop.permute.xlu0 %1948
        %vm1952 = vcmask 654912
        %1953 = vst.msk [vmem:[%s271] sm:$0xff] %vm1952, %v1947
        %1954 = vst.msk [vmem:[%s271 + $0x8] sm:$0xff] %vm1952, %v1949
        %1957 = vrot.lane.b32.xlu0 %v1824, 80
        %v1958 = vpop.permute.xlu0 %1957
        %1959 = vrot.lane.b32.xlu0 %v1826, 80
        %v1960 = vpop.permute.xlu0 %1959
        %vm1963 = vcmask 720512
        %1964 = vst.msk [vmem:[%s271] sm:$0xff] %vm1963, %v1958
        %1965 = vst.msk [vmem:[%s271 + $0x8] sm:$0xff] %vm1963, %v1960
        %1968 = vrot.lane.b32.xlu0 %v1829, 88
        %v1969 = vpop.permute.xlu0 %1968
        %1970 = vrot.lane.b32.xlu0 %v1831, 88
        %v1971 = vpop.permute.xlu0 %1970
        %vm1974 = vcmask 786112
        %1975 = vst.msk [vmem:[%s271] sm:$0xff] %vm1974, %v1969
        %1976 = vst.msk [vmem:[%s271 + $0x8] sm:$0xff] %vm1974, %v1971
        %1979 = vrot.lane.b32.xlu0 %v1834, 96
        %v1980 = vpop.permute.xlu0 %1979
        %1981 = vrot.lane.b32.xlu0 %v1836, 96
        %v1982 = vpop.permute.xlu0 %1981
        %vm1985 = vcmask 851712
        %1986 = vst.msk [vmem:[%s271] sm:$0xff] %vm1985, %v1980
        %1987 = vst.msk [vmem:[%s271 + $0x8] sm:$0xff] %vm1985, %v1982
        %1990 = vrot.lane.b32.xlu0 %v1839, 104
        %v1991 = vpop.permute.xlu0 %1990
        %1992 = vrot.lane.b32.xlu0 %v1841, 104
        %v1993 = vpop.permute.xlu0 %1992
        %vm1996 = vcmask 917312
        %1997 = vst.msk [vmem:[%s271] sm:$0xff] %vm1996, %v1991
        %1998 = vst.msk [vmem:[%s271 + $0x8] sm:$0xff] %vm1996, %v1993
        %2001 = vrot.lane.b32.xlu0 %v1844, 112
        %v2002 = vpop.permute.xlu0 %2001
        %2003 = vrot.lane.b32.xlu0 %v1846, 112
        %v2004 = vpop.permute.xlu0 %2003
        %vm2007 = vcmask 982912
        %2008 = vst.msk [vmem:[%s271] sm:$0xff] %vm2007, %v2002
        %2009 = vst.msk [vmem:[%s271 + $0x8] sm:$0xff] %vm2007, %v2004
        %2012 = vrot.lane.b32.xlu0 %v1849, 120
        %v2013 = vpop.permute.xlu0 %2012
        %2014 = vrot.lane.b32.xlu0 %v1851, 120
        %v2015 = vpop.permute.xlu0 %2014
        %vm2018 = vcmask 1048512
        %2019 = vst.msk [vmem:[%s271] sm:$0xff] %vm2018, %v2013
        %2020 = vst.msk [vmem:[%s271 + $0x8] sm:$0xff] %vm2018, %v2015
        %s2021 = sand.u32 %s181, 1
        %s2022 = scalar_lea.sflag [#allocation4], %s2021
        %s2023 = sand.u32 %s181, 1
        %s2024 = smul.addr %s2023, 16
        %s2025 = scalar_lea.vmem [#allocation3], %s2024
        // Predicated region
        $region49: #{tpu_custom_call.1} parent=47 // pred_check
          %p2026 = pneg %p191
        $region50: #{tpu_custom_call.1} parent=47 // pred_check_branch
          %2028 = sbr.rel (%p2026) target = $region52
        $region51: #{tpu_custom_call.1} parent=47 // pred_region
          %2030 = vsyncadd %s2022, 0
          %s2031 = smul.addr %s21, 2
          %s2032 = smul.addr %s2031, 8
          %s2033 = scalar_lea.hbm %s7, %s2032
          %s2034 = sshll.u32 %s2025, 4
          %s2035 = int_to_ptr.vmem [resolvable:$true] %s2034
          %s2036 = sshll.u32 %s2033, 4
          %s2037 = int_to_ptr.hbm [resolvable:$true] %s2036
          %2042 = dma.vmem_to_hbm [thread:$0]  %s2035, 256, %s2037, %s2022, 128, 128, 8
        $region52: #{tpu_custom_call.1} parent=47 // pred_fallthru
          _
      $region48: #{tpu_custom_call.1} parent=5 // pred_fallthru
        _
      %p2043 = scmp.le.s32.totalorder 2, %s16
      // Predicated region
      $region53: #{tpu_custom_call.1} parent=5 // pred_check
        %p2044 = pneg %p2043
      $region54: #{tpu_custom_call.1} parent=5 // pred_check_branch
        %2046 = sbr.rel (%p2044) target = $region56
      $region55: #{tpu_custom_call.1} parent=5 // pred_region
        %s2047 = ssub.s32 %s16, 2
        // Predicated region
        $region57: #{tpu_custom_call.1} parent=55 // pred_check
          %p2048 = pneg %p197
        $region58: #{tpu_custom_call.1} parent=55 // pred_check_branch
          %2050 = sbr.rel (%p2048) target = $region60
        $region59: #{tpu_custom_call.1} parent=55 // pred_region
          %s2051 = sand.u32 %s182, 1
          %s2052 = scalar_lea.sflag [#allocation4], %s2051
          %s2053 = sand.u32 %s182, 1
          %s2054 = smul.addr %s2053, 16
          %s2055 = scalar_lea.vmem [#allocation3], %s2054
          %2057 = dma.done %s2052, 256
        $region60: #{tpu_custom_call.1} parent=55 // pred_fallthru
          _
      $region56: #{tpu_custom_call.1} parent=5 // pred_fallthru
        _
    $region6: #{tpu_custom_call.1} parent=1 // loop_footer
      %s20 = sadd.s32 1, %s16
    $region7: #{tpu_custom_call.1} parent=1 // loop_footer_branch
      %15 = sbr.rel target = $region3
    $region8: #{tpu_custom_call.1} parent=1 // loop_exit
      _
    %2058 = vsyncpa [#allocation4], 1
    %s2059 = scalar_lea.sflag [#allocation4], 1
    %2060 = vsyncpa %s2059, 1

</llo_original>
